<compile_context>
chip_gen: v7x
topology: tpu7x:2x2x1
jax: 0.10.0
libtpu: 0.0.40
codegen_flags: <defaults>
</compile_context>

<pallas_src>
import math

import numpy as np
import jax
import jax.numpy as jnp
from jax.experimental import pallas as pl
from jax.experimental.pallas import tpu as pltpu


# ----------------------------------------------------------------------------
# Fused kernel (one image per grid step)
# ----------------------------------------------------------------------------

def _make_fused_iuv_kernel(num_convs, C, H, W, C_out):
    HW = H * W

    def kernel(*refs):
        x_ref = refs[0]
        conv_refs = refs[1:1 + 2 * num_convs]
        wo_ref, bo_ref, bup_ref, o_ref = refs[1 + 2 * num_convs:]

        # Boundary masks for the zero-padded 3x3 conv in the flattened
        # (C, H*W) layout.  Built once, reused by every conv layer.
        lane = jax.lax.broadcasted_iota(jnp.int32, (C, HW), 1)
        if W & (W - 1) == 0:
            col = lane & (W - 1)
        else:
            col = jax.lax.rem(lane, W)
        m_top = lane >= W                  # source row y-1 is valid
        m_bot = lane < (H - 1) * W         # source row y+1 is valid
        m_left = col != 0                  # source col x-1 is valid
        m_right = col != (W - 1)           # source col x+1 is valid
        row_masks = {-1: m_top, 0: None, 1: m_bot}
        col_masks = {-1: m_left, 0: None, 1: m_right}

        def im2col(h):
            # h: (C, HW) -> (9*C, HW) patch matrix; taps ordered (dy, dx)
            # row-major to match the (Cout, 3, 3, Cin)-reshaped weights.
            rows = []
            for dy in (-1, 0, 1):
                for dx in (-1, 0, 1):
                    off = dy * W + dx
                    if off == 0:
                        s = h
                    else:
                        # shifted[p] = h[p + off]  (wrap-around gets masked)
                        s = pltpu.roll(h, (-off) % HW, 1)
                    m = row_masks[dy]
                    cm = col_masks[dx]
                    if m is None:
                        m = cm
                    elif cm is not None:
                        m = jnp.logical_and(m, cm)
                    if m is not None:
                        s = jnp.where(m, s, 0.0)
                    rows.append(s)
            return jnp.concatenate(rows, axis=0)   # sublane-aligned concat

        h = x_ref[...]                                           # (C, HW)
        for i in range(num_convs):
            w2d = conv_refs[2 * i][...]                          # (C, 9*C)
            b = conv_refs[2 * i + 1][...]                        # (C, 1)
            patches = im2col(h)                                  # (9*C, HW)
            h = jnp.dot(w2d, patches, preferred_element_type=jnp.float32)
            h = jnp.maximum(h + b, 0.0)                          # bias + ReLU

        # Final 1x1 conv (no activation).
        logits = jnp.dot(wo_ref[...], h, preferred_element_type=jnp.float32)
        logits = logits + bo_ref[...]                            # (C_out, HW)

        # aligned_bilinear upsample as a single matmul with kron(A_h, A_w)^T.
        o_ref[...] = jnp.dot(logits, bup_ref[...],
                             preferred_element_type=jnp.float32)  # (C_out, OH*OW)

    return kernel


# ----------------------------------------------------------------------------
# aligned_bilinear interpolation matrix (replicates AdelaiDet's aligned_bilinear:
#   replicate-pad bottom/right by 1, F.interpolate(align_corners=True) to
#   factor*h+1, replicate-pad top/left by factor//2, crop to factor*h)
# ----------------------------------------------------------------------------

def make_aligned_bilinear_matrix(size, factor):
    out = factor * size
    A = np.zeros((out, size), dtype=np.float32)
    for j in range(out):
        o = max(j - factor // 2, 0)          # top/left replicate pad + crop
        i0 = o // factor                      # align_corners src = o / factor
        frac = (o % factor) / float(factor)
        i1 = min(i0 + 1, size - 1)            # bottom/right replicate pad folded in
        A[j, i0] += 1.0 - frac
        A[j, i1] += frac
    return A


# ----------------------------------------------------------------------------
# GlobalIUVHead forward (single fused pallas_call)
# ----------------------------------------------------------------------------

def global_iuv_head_forward(iuv_feats, params, iuv_feat_stride, iuv_out_stride,
                            instances=None):
    # iuv_feats: NCHW float32, like the PyTorch module.
    assert iuv_feat_stride >= iuv_out_stride
    assert iuv_feat_stride % iuv_out_stride == 0
    factor = int(iuv_feat_stride // iuv_out_stride)

    N, C, H, W = iuv_feats.shape
    HW = H * W
    OH, OW = factor * H, factor * W
    C_out = params["w_out"].shape[0]
    num_convs = len(params["tower_convs"])

    # Flatten spatial onto the lane axis (cheap contiguous reshape).
    x_flat = iuv_feats.reshape(N, C, HW)

    # Pre-reshape weights so the kernel never reshapes awkwardly tiled buffers.
    # w: (Cout, Cin, 3, 3) -> (Cout, 9*Cin) with tap-major / channel-minor rows.
    flat_params = []
    for (w, b) in params["tower_convs"]:
        flat_params.append(jnp.transpose(w, (0, 2, 3, 1)).reshape(C, 9 * C))
        flat_params.append(b.reshape(C, 1))
    w_out = params["w_out"].reshape(C_out, C)
    b_out = params["b_out"].reshape(C_out, 1)

    # aligned_bilinear as one matmul: B[y*W+x, oy*OW+ox] = A_h[oy,y]*A_w[ox,x].
    a_h = make_aligned_bilinear_matrix(H, factor)
    a_w = make_aligned_bilinear_matrix(W, factor)
    b_up = jnp.asarray(np.kron(a_h, a_w).T)        # (H*W, OH*OW)

    kernel = _make_fused_iuv_kernel(num_convs, C, H, W, C_out)

    in_specs = [pl.BlockSpec((None, C, HW), lambda n: (n, 0, 0))]
    for _ in range(num_convs):
        in_specs.append(pl.BlockSpec((C, 9 * C), lambda n: (0, 0)))
        in_specs.append(pl.BlockSpec((C, 1), lambda n: (0, 0)))
    in_specs += [
        pl.BlockSpec((C_out, C), lambda n: (0, 0)),
        pl.BlockSpec((C_out, 1), lambda n: (0, 0)),
        pl.BlockSpec((HW, OH * OW), lambda n: (0, 0)),
    ]

    out = pl.pallas_call(
        kernel,
        out_shape=jax.ShapeDtypeStruct((N, C_out, OH * OW), jnp.float32),
        grid=(N,),
        in_specs=in_specs,
        out_specs=pl.BlockSpec((None, C_out, OH * OW), lambda n: (n, 0, 0)),
        compiler_params=pltpu.CompilerParams(
            dimension_semantics=("parallel",),   # image axis -> both v7x cores
        ),
    )(x_flat, *flat_params, w_out, b_out, b_up)

    return out.reshape(N, C_out, OH, OW)


# ----------------------------------------------------------------------------
# Pure-JAX reference (for correctness check)
# ----------------------------------------------------------------------------

def _reference_forward(iuv_feats, params, factor):
    hi = jax.lax.Precision.HIGHEST
    x = iuv_feats
    for (w, b) in params["tower_convs"]:
        x = jax.lax.conv_general_dilated(
            x, w, window_strides=(1, 1), padding=((1, 1), (1, 1)),
            dimension_numbers=("NCHW", "OIHW", "NCHW"), precision=hi)
        x = jnp.maximum(x + b[None, :, None, None], 0.0)
    logits = jnp.einsum("oc,nchw->nohw", params["w_out"], x, precision=hi)
    logits = logits + params["b_out"][None, :, None, None]
    H, W = logits.shape[2:]
    a_h = jnp.asarray(make_aligned_bilinear_matrix(H, factor))
    a_w = jnp.asarray(make_aligned_bilinear_matrix(W, factor))
    return jnp.einsum("oy,ncyx,px->ncop", a_h, logits, a_w, precision=hi)


# ----------------------------------------------------------------------------
# Deterministic synthetic parameter init (kaiming-uniform-style bounds)
# ----------------------------------------------------------------------------

def init_params(key, channels, num_convs, num_outputs):
    params = {"tower_convs": []}
    for _ in range(num_convs):
        key, k1, k2 = jax.random.split(key, 3)
        fan_in = channels * 9
        bound = math.sqrt(3.0 / fan_in)
        w = jax.random.uniform(k1, (channels, channels, 3, 3), jnp.float32,
                               -bound, bound)
        b = jax.random.uniform(k2, (channels,), jnp.float32, -bound, bound)
        params["tower_convs"].append((w, b))
    key, k1, k2 = jax.random.split(key, 3)
    c_out = max(num_outputs, 1)
    bound = math.sqrt(1.0 / channels)
    params["w_out"] = jax.random.uniform(k1, (c_out, channels), jnp.float32,
                                         -bound, bound)
    params["b_out"] = jax.random.uniform(k2, (c_out,), jnp.float32,
                                         -bound, bound)
    return params


if __name__ == "__main__":
    N, C, H, W = 2, 16, 16, 16
    num_convs = 2
    num_outputs = 8
    iuv_feat_stride = 8
    iuv_out_stride = 4
    factor = iuv_feat_stride // iuv_out_stride

    key = jax.random.PRNGKey(0)
    kx, kp = jax.random.split(key)
    iuv_feats = jax.random.normal(kx, (N, C, H, W), jnp.float32)
    params = init_params(kp, C, num_convs, num_outputs)

    out = global_iuv_head_forward(iuv_feats, params, iuv_feat_stride,
                                  iuv_out_stride)
    out = jax.block_until_ready(out)

    assert out.shape == (N, max(num_outputs, 1), factor * H, factor * W), out.shape
    assert bool(jnp.all(jnp.isfinite(out)))

    ref = jax.block_until_ready(_reference_forward(iuv_feats, params, factor))
    np.testing.assert_allclose(np.asarray(out), np.asarray(ref),
                               rtol=2e-2, atol=2e-2)
    print("KERNEL_OK")
</pallas_src>

<mosaic_0001>
module attributes {stable_mosaic.version = 11 : i64} {
  func.func @kernel(%arg0: i32, %arg1: memref<1x16x256xf32, #tpu.memory_space<vmem>>, %arg2: memref<16x144xf32, #tpu.memory_space<vmem>>, %arg3: memref<16x1xf32, #tpu.memory_space<vmem>>, %arg4: memref<16x144xf32, #tpu.memory_space<vmem>>, %arg5: memref<16x1xf32, #tpu.memory_space<vmem>>, %arg6: memref<8x16xf32, #tpu.memory_space<vmem>>, %arg7: memref<8x1xf32, #tpu.memory_space<vmem>>, %arg8: memref<256x1024xf32, #tpu.memory_space<vmem>>, %arg9: memref<1x8x1024xf32, #tpu.memory_space<vmem>>) attributes {dimension_semantics = [#tpu.dimension_semantics<parallel>], iteration_bounds = array<i64: 2>, scalar_prefetch = 0 : i64, scratch_operands = 0 : i64, tpu.core_type = #tpu.core_type<tc>, window_params = [{transform_indices = @transform_0, window_bounds = array<i64: 1, 16, 256>}, {pipeline_mode = #tpu.pipeline_mode<synchronous>, transform_indices = @transform_1, window_bounds = array<i64: 16, 144>}, {pipeline_mode = #tpu.pipeline_mode<synchronous>, transform_indices = @transform_2, window_bounds = array<i64: 16, 1>}, {pipeline_mode = #tpu.pipeline_mode<synchronous>, transform_indices = @transform_3, window_bounds = array<i64: 16, 144>}, {pipeline_mode = #tpu.pipeline_mode<synchronous>, transform_indices = @transform_4, window_bounds = array<i64: 16, 1>}, {pipeline_mode = #tpu.pipeline_mode<synchronous>, transform_indices = @transform_5, window_bounds = array<i64: 8, 16>}, {pipeline_mode = #tpu.pipeline_mode<synchronous>, transform_indices = @transform_6, window_bounds = array<i64: 8, 1>}, {pipeline_mode = #tpu.pipeline_mode<synchronous>, transform_indices = @transform_7, window_bounds = array<i64: 256, 1024>}, {transform_indices = @transform_8, window_bounds = array<i64: 1, 8, 1024>}]} {
    %0 = tpu.iota {dimensions = array<i32: 1>} : vector<16x256xi32>
    %c15_i32 = arith.constant 15 : i32
    %1 = vector.broadcast %c15_i32 : i32 to vector<16x256xi32>
    %2 = arith.andi %0, %1 : vector<16x256xi32>
    %c16_i32 = arith.constant 16 : i32
    %3 = vector.broadcast %c16_i32 : i32 to vector<16x256xi32>
    %4 = arith.cmpi sge, %0, %3 : vector<16x256xi32>
    %c240_i32 = arith.constant 240 : i32
    %5 = vector.broadcast %c240_i32 : i32 to vector<16x256xi32>
    %6 = arith.cmpi slt, %0, %5 : vector<16x256xi32>
    %c0_i32 = arith.constant 0 : i32
    %7 = vector.broadcast %c0_i32 : i32 to vector<16x256xi32>
    %8 = arith.cmpi ne, %2, %7 : vector<16x256xi32>
    %c15_i32_0 = arith.constant 15 : i32
    %9 = vector.broadcast %c15_i32_0 : i32 to vector<16x256xi32>
    %10 = arith.cmpi ne, %2, %9 : vector<16x256xi32>
    %c0 = arith.constant 0 : index
    %c0_1 = arith.constant 0 : index
    %c0_2 = arith.constant 0 : index
    %11 = vector.load %arg1[%c0, %c0_1, %c0_2] : memref<1x16x256xf32, #tpu.memory_space<vmem>>, vector<1x16x256xf32>
    %12 = vector.shape_cast %11 : vector<1x16x256xf32> to vector<16x256xf32>
    %c0_3 = arith.constant 0 : index
    %c0_4 = arith.constant 0 : index
    %13 = vector.load %arg2[%c0_3, %c0_4] : memref<16x144xf32, #tpu.memory_space<vmem>>, vector<16x144xf32>
    %c0_5 = arith.constant 0 : index
    %c0_6 = arith.constant 0 : index
    %14 = vector.load %arg3[%c0_5, %c0_6] : memref<16x1xf32, #tpu.memory_space<vmem>>, vector<16x1xf32>
    %c17_i32 = arith.constant 17 : i32
    %15 = tpu.dynamic_rotate %12 by %c17_i32 dim 1 : vector<16x256xf32>, i32 -> vector<16x256xf32>
    %16 = arith.andi %4, %8 : vector<16x256xi1>
    %cst = arith.constant 0.000000e+00 : f32
    %17 = vector.broadcast %cst : f32 to vector<16x256xf32>
    %18 = arith.select %16, %15, %17 : vector<16x256xi1>, vector<16x256xf32>
    %c16_i32_7 = arith.constant 16 : i32
    %19 = tpu.dynamic_rotate %12 by %c16_i32_7 dim 1 : vector<16x256xf32>, i32 -> vector<16x256xf32>
    %cst_8 = arith.constant 0.000000e+00 : f32
    %20 = vector.broadcast %cst_8 : f32 to vector<16x256xf32>
    %21 = arith.select %4, %19, %20 : vector<16x256xi1>, vector<16x256xf32>
    %c15_i32_9 = arith.constant 15 : i32
    %22 = tpu.dynamic_rotate %12 by %c15_i32_9 dim 1 : vector<16x256xf32>, i32 -> vector<16x256xf32>
    %23 = arith.andi %4, %10 : vector<16x256xi1>
    %cst_10 = arith.constant 0.000000e+00 : f32
    %24 = vector.broadcast %cst_10 : f32 to vector<16x256xf32>
    %25 = arith.select %23, %22, %24 : vector<16x256xi1>, vector<16x256xf32>
    %c1_i32 = arith.constant 1 : i32
    %26 = tpu.dynamic_rotate %12 by %c1_i32 dim 1 : vector<16x256xf32>, i32 -> vector<16x256xf32>
    %cst_11 = arith.constant 0.000000e+00 : f32
    %27 = vector.broadcast %cst_11 : f32 to vector<16x256xf32>
    %28 = arith.select %8, %26, %27 : vector<16x256xi1>, vector<16x256xf32>
    %c255_i32 = arith.constant 255 : i32
    %29 = tpu.dynamic_rotate %12 by %c255_i32 dim 1 : vector<16x256xf32>, i32 -> vector<16x256xf32>
    %cst_12 = arith.constant 0.000000e+00 : f32
    %30 = vector.broadcast %cst_12 : f32 to vector<16x256xf32>
    %31 = arith.select %10, %29, %30 : vector<16x256xi1>, vector<16x256xf32>
    %c241_i32 = arith.constant 241 : i32
    %32 = tpu.dynamic_rotate %12 by %c241_i32 dim 1 : vector<16x256xf32>, i32 -> vector<16x256xf32>
    %33 = arith.andi %6, %8 : vector<16x256xi1>
    %cst_13 = arith.constant 0.000000e+00 : f32
    %34 = vector.broadcast %cst_13 : f32 to vector<16x256xf32>
    %35 = arith.select %33, %32, %34 : vector<16x256xi1>, vector<16x256xf32>
    %c240_i32_14 = arith.constant 240 : i32
    %36 = tpu.dynamic_rotate %12 by %c240_i32_14 dim 1 : vector<16x256xf32>, i32 -> vector<16x256xf32>
    %cst_15 = arith.constant 0.000000e+00 : f32
    %37 = vector.broadcast %cst_15 : f32 to vector<16x256xf32>
    %38 = arith.select %6, %36, %37 : vector<16x256xi1>, vector<16x256xf32>
    %c239_i32 = arith.constant 239 : i32
    %39 = tpu.dynamic_rotate %12 by %c239_i32 dim 1 : vector<16x256xf32>, i32 -> vector<16x256xf32>
    %40 = arith.andi %6, %10 : vector<16x256xi1>
    %cst_16 = arith.constant 0.000000e+00 : f32
    %41 = vector.broadcast %cst_16 : f32 to vector<16x256xf32>
    %42 = arith.select %40, %39, %41 : vector<16x256xi1>, vector<16x256xf32>
    %43 = tpu.concatenate %18, %21, %25, %28, %12, %31, %35, %38, %42 in 0 : vector<16x256xf32>, vector<16x256xf32>, vector<16x256xf32>, vector<16x256xf32>, vector<16x256xf32>, vector<16x256xf32>, vector<16x256xf32>, vector<16x256xf32>, vector<16x256xf32> -> vector<144x256xf32>
    %cst_17 = arith.constant dense<0.000000e+00> : vector<16x256xf32>
    %44 = tpu.matmul %13, %43, %cst_17 {dimension_numbers = #tpu.dot_dimension_numbers<[1], [0], [0], [1], [0, 0, 1, 1], [], []>} : vector<16x144xf32>, vector<144x256xf32>, vector<16x256xf32> -> vector<16x256xf32>
    %45 = vector.broadcast %14 : vector<16x1xf32> to vector<16x256xf32>
    %46 = arith.addf %44, %45 : vector<16x256xf32>
    %cst_18 = arith.constant 0.000000e+00 : f32
    %47 = vector.broadcast %cst_18 : f32 to vector<16x256xf32>
    %48 = arith.maximumf %46, %47 : vector<16x256xf32>
    %c0_19 = arith.constant 0 : index
    %c0_20 = arith.constant 0 : index
    %49 = vector.load %arg4[%c0_19, %c0_20] : memref<16x144xf32, #tpu.memory_space<vmem>>, vector<16x144xf32>
    %c0_21 = arith.constant 0 : index
    %c0_22 = arith.constant 0 : index
    %50 = vector.load %arg5[%c0_21, %c0_22] : memref<16x1xf32, #tpu.memory_space<vmem>>, vector<16x1xf32>
    %c17_i32_23 = arith.constant 17 : i32
    %51 = tpu.dynamic_rotate %48 by %c17_i32_23 dim 1 : vector<16x256xf32>, i32 -> vector<16x256xf32>
    %52 = arith.andi %4, %8 : vector<16x256xi1>
    %cst_24 = arith.constant 0.000000e+00 : f32
    %53 = vector.broadcast %cst_24 : f32 to vector<16x256xf32>
    %54 = arith.select %52, %51, %53 : vector<16x256xi1>, vector<16x256xf32>
    %c16_i32_25 = arith.constant 16 : i32
    %55 = tpu.dynamic_rotate %48 by %c16_i32_25 dim 1 : vector<16x256xf32>, i32 -> vector<16x256xf32>
    %cst_26 = arith.constant 0.000000e+00 : f32
    %56 = vector.broadcast %cst_26 : f32 to vector<16x256xf32>
    %57 = arith.select %4, %55, %56 : vector<16x256xi1>, vector<16x256xf32>
    %c15_i32_27 = arith.constant 15 : i32
    %58 = tpu.dynamic_rotate %48 by %c15_i32_27 dim 1 : vector<16x256xf32>, i32 -> vector<16x256xf32>
    %59 = arith.andi %4, %10 : vector<16x256xi1>
    %cst_28 = arith.constant 0.000000e+00 : f32
    %60 = vector.broadcast %cst_28 : f32 to vector<16x256xf32>
    %61 = arith.select %59, %58, %60 : vector<16x256xi1>, vector<16x256xf32>
    %c1_i32_29 = arith.constant 1 : i32
    %62 = tpu.dynamic_rotate %48 by %c1_i32_29 dim 1 : vector<16x256xf32>, i32 -> vector<16x256xf32>
    %cst_30 = arith.constant 0.000000e+00 : f32
    %63 = vector.broadcast %cst_30 : f32 to vector<16x256xf32>
    %64 = arith.select %8, %62, %63 : vector<16x256xi1>, vector<16x256xf32>
    %c255_i32_31 = arith.constant 255 : i32
    %65 = tpu.dynamic_rotate %48 by %c255_i32_31 dim 1 : vector<16x256xf32>, i32 -> vector<16x256xf32>
    %cst_32 = arith.constant 0.000000e+00 : f32
    %66 = vector.broadcast %cst_32 : f32 to vector<16x256xf32>
    %67 = arith.select %10, %65, %66 : vector<16x256xi1>, vector<16x256xf32>
    %c241_i32_33 = arith.constant 241 : i32
    %68 = tpu.dynamic_rotate %48 by %c241_i32_33 dim 1 : vector<16x256xf32>, i32 -> vector<16x256xf32>
    %69 = arith.andi %6, %8 : vector<16x256xi1>
    %cst_34 = arith.constant 0.000000e+00 : f32
    %70 = vector.broadcast %cst_34 : f32 to vector<16x256xf32>
    %71 = arith.select %69, %68, %70 : vector<16x256xi1>, vector<16x256xf32>
    %c240_i32_35 = arith.constant 240 : i32
    %72 = tpu.dynamic_rotate %48 by %c240_i32_35 dim 1 : vector<16x256xf32>, i32 -> vector<16x256xf32>
    %cst_36 = arith.constant 0.000000e+00 : f32
    %73 = vector.broadcast %cst_36 : f32 to vector<16x256xf32>
    %74 = arith.select %6, %72, %73 : vector<16x256xi1>, vector<16x256xf32>
    %c239_i32_37 = arith.constant 239 : i32
    %75 = tpu.dynamic_rotate %48 by %c239_i32_37 dim 1 : vector<16x256xf32>, i32 -> vector<16x256xf32>
    %76 = arith.andi %6, %10 : vector<16x256xi1>
    %cst_38 = arith.constant 0.000000e+00 : f32
    %77 = vector.broadcast %cst_38 : f32 to vector<16x256xf32>
    %78 = arith.select %76, %75, %77 : vector<16x256xi1>, vector<16x256xf32>
    %79 = tpu.concatenate %54, %57, %61, %64, %48, %67, %71, %74, %78 in 0 : vector<16x256xf32>, vector<16x256xf32>, vector<16x256xf32>, vector<16x256xf32>, vector<16x256xf32>, vector<16x256xf32>, vector<16x256xf32>, vector<16x256xf32>, vector<16x256xf32> -> vector<144x256xf32>
    %cst_39 = arith.constant dense<0.000000e+00> : vector<16x256xf32>
    %80 = tpu.matmul %49, %79, %cst_39 {dimension_numbers = #tpu.dot_dimension_numbers<[1], [0], [0], [1], [0, 0, 1, 1], [], []>} : vector<16x144xf32>, vector<144x256xf32>, vector<16x256xf32> -> vector<16x256xf32>
    %81 = vector.broadcast %50 : vector<16x1xf32> to vector<16x256xf32>
    %82 = arith.addf %80, %81 : vector<16x256xf32>
    %cst_40 = arith.constant 0.000000e+00 : f32
    %83 = vector.broadcast %cst_40 : f32 to vector<16x256xf32>
    %84 = arith.maximumf %82, %83 : vector<16x256xf32>
    %c0_41 = arith.constant 0 : index
    %c0_42 = arith.constant 0 : index
    %85 = vector.load %arg6[%c0_41, %c0_42] : memref<8x16xf32, #tpu.memory_space<vmem>>, vector<8x16xf32>
    %cst_43 = arith.constant dense<0.000000e+00> : vector<8x256xf32>
    %86 = tpu.matmul %85, %84, %cst_43 {dimension_numbers = #tpu.dot_dimension_numbers<[1], [0], [0], [1], [0, 0, 1, 1], [], []>} : vector<8x16xf32>, vector<16x256xf32>, vector<8x256xf32> -> vector<8x256xf32>
    %c0_44 = arith.constant 0 : index
    %c0_45 = arith.constant 0 : index
    %87 = vector.load %arg7[%c0_44, %c0_45] : memref<8x1xf32, #tpu.memory_space<vmem>>, vector<8x1xf32>
    %88 = vector.broadcast %87 : vector<8x1xf32> to vector<8x256xf32>
    %89 = arith.addf %86, %88 : vector<8x256xf32>
    %c0_46 = arith.constant 0 : index
    %c0_47 = arith.constant 0 : index
    %90 = vector.load %arg8[%c0_46, %c0_47] : memref<256x1024xf32, #tpu.memory_space<vmem>>, vector<256x1024xf32>
    %cst_48 = arith.constant dense<0.000000e+00> : vector<8x1024xf32>
    %91 = tpu.matmul %89, %90, %cst_48 {dimension_numbers = #tpu.dot_dimension_numbers<[1], [0], [0], [1], [0, 0, 1, 1], [], []>} : vector<8x256xf32>, vector<256x1024xf32>, vector<8x1024xf32> -> vector<8x1024xf32>
    %c0_49 = arith.constant 0 : index
    %c0_50 = arith.constant 0 : index
    %c0_51 = arith.constant 0 : index
    %92 = vector.load %arg9[%c0_49, %c0_50, %c0_51] : memref<1x8x1024xf32, #tpu.memory_space<vmem>>, vector<1x8x1024xf32>
    %93 = vector.shape_cast %92 : vector<1x8x1024xf32> to vector<8x1024xf32>
    %94 = vector.shape_cast %91 : vector<8x1024xf32> to vector<1x8x1024xf32>
    tpu.vector_store %arg9[%c0_49, %c0_50, %c0_51], %94 {strides = array<i32>} : memref<1x8x1024xf32, #tpu.memory_space<vmem>>, vector<1x8x1024xf32>,
    return
  }
  func.func @transform_0(%arg0: i32) -> (i32, i32, i32) {
    %c0_i32 = arith.constant 0 : i32
    %c0_i32_0 = arith.constant 0 : i32
    %c0_i32_1 = arith.constant 0 : i32
    return %arg0, %c0_i32, %c0_i32_0 : i32, i32, i32
  }
  func.func @transform_1(%arg0: i32) -> (i32, i32) {
    %c0_i32 = arith.constant 0 : i32
    %c0_i32_0 = arith.constant 0 : i32
    %c0_i32_1 = arith.constant 0 : i32
    return %c0_i32, %c0_i32_0 : i32, i32
  }
  func.func @transform_2(%arg0: i32) -> (i32, i32) {
    %c0_i32 = arith.constant 0 : i32
    %c0_i32_0 = arith.constant 0 : i32
    %c0_i32_1 = arith.constant 0 : i32
    return %c0_i32, %c0_i32_0 : i32, i32
  }
  func.func @transform_3(%arg0: i32) -> (i32, i32) {
    %c0_i32 = arith.constant 0 : i32
    %c0_i32_0 = arith.constant 0 : i32
    %c0_i32_1 = arith.constant 0 : i32
    return %c0_i32, %c0_i32_0 : i32, i32
  }
  func.func @transform_4(%arg0: i32) -> (i32, i32) {
    %c0_i32 = arith.constant 0 : i32
    %c0_i32_0 = arith.constant 0 : i32
    %c0_i32_1 = arith.constant 0 : i32
    return %c0_i32, %c0_i32_0 : i32, i32
  }
  func.func @transform_5(%arg0: i32) -> (i32, i32) {
    %c0_i32 = arith.constant 0 : i32
    %c0_i32_0 = arith.constant 0 : i32
    %c0_i32_1 = arith.constant 0 : i32
    return %c0_i32, %c0_i32_0 : i32, i32
  }
  func.func @transform_6(%arg0: i32) -> (i32, i32) {
    %c0_i32 = arith.constant 0 : i32
    %c0_i32_0 = arith.constant 0 : i32
    %c0_i32_1 = arith.constant 0 : i32
    return %c0_i32, %c0_i32_0 : i32, i32
  }
  func.func @transform_7(%arg0: i32) -> (i32, i32) {
    %c0_i32 = arith.constant 0 : i32
    %c0_i32_0 = arith.constant 0 : i32
    %c0_i32_1 = arith.constant 0 : i32
    return %c0_i32, %c0_i32_0 : i32, i32
  }
  func.func @transform_8(%arg0: i32) -> (i32, i32, i32) {
    %c0_i32 = arith.constant 0 : i32
    %c0_i32_0 = arith.constant 0 : i32
    %c0_i32_1 = arith.constant 0 : i32
    return %arg0, %c0_i32, %c0_i32_0 : i32, i32, i32
  }
}

</mosaic_0001>

<llo_original>
// kernel: tpu_custom_call.1
$region0: #{tpu_custom_call.1}
  #allocation0 [shape = 'u32[]', space=smem, size = 0x4, offset = 0x4, fixed_abs, tag = 'smem constant byte address 0x4 - core index']
  #allocation1 [shape = 'u32[144,128]{1,0:T(1,128)}', space=vmem, size = 0x12000, scoped, tag = 'internal scratch']
  %s0 = inlined_call_operand.hbm [shape: f32[2,16,256], index: 0, kind: input, shape index: {}]
  %s1 = inlined_call_operand.vmem [shape: f32[16,144], index: 1, kind: input, shape index: {}]
  %s2 = inlined_call_operand.vmem [shape: f32[16,1], index: 2, kind: input, shape index: {}]
  %s3 = inlined_call_operand.hbm [shape: f32[16,144], index: 3, kind: input, shape index: {}]
  %s4 = inlined_call_operand.vmem [shape: f32[16,1], index: 4, kind: input, shape index: {}]
  %s5 = inlined_call_operand.vmem [shape: f32[8,16], index: 5, kind: input, shape index: {}]
  %s6 = inlined_call_operand.vmem [shape: f32[8,1], index: 6, kind: input, shape index: {}]
  %s7 = inlined_call_operand.hbm [shape: f32[256,1024], index: 7, kind: input, shape index: {}]
  %s8 = inlined_call_operand.hbm [shape: f32[2,8,1024], index: 8, kind: output, shape index: {}]
  %s9 = sld [smem:[#allocation0]]
  $region77: #{tpu_custom_call.1} parent=0
    _
  %s11 = ssub.s32 1, %s9
  %s12 = scalar_select 0, %s11, %s9
  $region1: #{tpu_custom_call.1} parent=0
    #allocation2 [shape = 'u8[32768]{0}', space=vmem, size = 0x8000, scoped, tag = 'input window, operand 0']
    #allocation3 [shape = 's32[2]{0}', space=sflag, size = 0x8, scoped, tag = 'scoped memory for tpu_custom_call.1']
    #allocation4 [shape = 's32[2]{0}', space=sflag, size = 0x8, scoped, tag = 'scoped memory for tpu_custom_call.1']
    #allocation5 [shape = 'u8[16384]{0}', space=vmem, size = 0x4000, scoped, tag = 'input window, operand 3, single buffered']
    #allocation6 [shape = 's32[1]{0}', space=sflag, size = 0x4, scoped, tag = 'scoped memory for tpu_custom_call.1']
    #allocation7 [shape = 'u8[1048576]{0}', space=vmem, size = 0x100000, scoped, tag = 'input window, operand 7, single buffered']
    #allocation8 [shape = 'u8[65536]{0}', space=vmem, size = 0x10000, scoped, tag = 'output window, operand 0']
    %13 = vsyncpa [#allocation3], 0
    %s14 = scalar_lea.sflag [#allocation3], 1
    %15 = vsyncpa %s14, 0
    %16 = vsyncpa [#allocation6], 0
    %17 = vsyncpa [#allocation4], 0
    %s18 = scalar_lea.sflag [#allocation4], 1
    %19 = vsyncpa %s18, 0
    loop: start=0, step=1, limit=4
    $region2: #{tpu_custom_call.1} parent=1 // loop_pre_header
      _
    $region3: #{tpu_custom_call.1} parent=1 // loop_header
      %s21 = sphi 0, %s25
      %p22 = scmp.ge.s32.totalorder %s21, 4
      %s31 = sphi 0, %s33
      %s34 = sphi 0, %s31
      %s35 = sphi 0, %s34
      %s51 = sphi 0, %s35
      %s55 = sphi 0, %s55
      %s57 = sphi 0, %s55
      %s58 = sphi 0, %s57
      %s72 = sphi 0, %s58
      %s76 = sphi 0, %s76
      %s78 = sphi 0, %s76
      %s79 = sphi 0, %s78
      %s93 = sphi 0, %s79
      %s97 = sphi 0, %s97
      %s99 = sphi 0, %s97
      %s100 = sphi 0, %s99
      %s114 = sphi 0, %s100
      %s118 = sphi 0, %s118
      %s120 = sphi 0, %s118
      %s121 = sphi 0, %s120
      %s135 = sphi 0, %s121
      %s139 = sphi 0, %s139
      %s141 = sphi 0, %s139
      %s142 = sphi 0, %s141
      %s156 = sphi 0, %s142
      %s160 = sphi 0, %s160
      %s162 = sphi 0, %s160
      %s163 = sphi 0, %s162
      %s177 = sphi 0, %s163
      %s181 = sphi 0, %s181
      %s183 = sphi 0, %s181
      %s184 = sphi 0, %s183
      %s198 = sphi 0, %s184
      %s204 = sphi 0, %s206
      %s207 = sphi 0, %s204
      %s208 = sphi 0, %s207
      %s224 = sphi 0, %s208
    $region4: #{tpu_custom_call.1} parent=1 // loop_header_branch
      %24 = sbr.rel (%p22) target = $region8
    $region5: #{tpu_custom_call.1} parent=1 // loop_body
      %s26 = ssub.s32 %s21, 1
      %s27 = ssub.s32 %s21, 2
      %s28 = sadd.s32 %s21, 1
      %s29 = ssub.s32 %s21, %s28
      %p30 = scmp.eq.s32.totalorder %s29, 0
      %s32 = sadd.s32 %s31, 1
      %s33 = scalar_select %p30, %s31, %s32
      %p36 = pneg %p30
      %p37 = scmp.eq.s32.totalorder %s21, 1
      %p38 = por %p36, %p37
      %p39 = scmp.ne.s32.totalorder %s31, %s34
      %p40 = scmp.eq.s32.totalorder %s21, 0
      %p41 = por %p39, %p40
      %p42 = scmp.ne.s32.totalorder %s31, %s34
      %p43 = scmp.eq.s32.totalorder %s26, 1
      %p44 = por %p42, %p43
      %p45 = scmp.ne.s32.totalorder %s34, %s35
      %p46 = scmp.eq.s32.totalorder %s26, 0
      %p47 = por %p45, %p46
      %p48 = scmp.ne.s32.totalorder %s34, %s35
      %p49 = scmp.eq.s32.totalorder %s27, 1
      %p50 = por %p48, %p49
      %p52 = scmp.ne.s32.totalorder %s35, %s51
      %p53 = scmp.eq.s32.totalorder %s27, 0
      %p54 = por %p52, %p53
      %s56 = sadd.s32 %s55, 1
      %p59 = scmp.eq.s32.totalorder %s21, 1
      %p60 = scmp.ne.s32.totalorder %s55, %s57
      %p61 = scmp.eq.s32.totalorder %s21, 0
      %p62 = por %p60, %p61
      %p63 = scmp.ne.s32.totalorder %s55, %s57
      %p64 = scmp.eq.s32.totalorder %s26, 1
      %p65 = por %p63, %p64
      %p66 = scmp.ne.s32.totalorder %s57, %s58
      %p67 = scmp.eq.s32.totalorder %s26, 0
      %p68 = por %p66, %p67
      %p69 = scmp.ne.s32.totalorder %s57, %s58
      %p70 = scmp.eq.s32.totalorder %s27, 1
      %p71 = por %p69, %p70
      %p73 = scmp.ne.s32.totalorder %s58, %s72
      %p74 = scmp.eq.s32.totalorder %s27, 0
      %p75 = por %p73, %p74
      %s77 = sadd.s32 %s76, 1
      %p80 = scmp.eq.s32.totalorder %s21, 1
      %p81 = scmp.ne.s32.totalorder %s76, %s78
      %p82 = scmp.eq.s32.totalorder %s21, 0
      %p83 = por %p81, %p82
      %p84 = scmp.ne.s32.totalorder %s76, %s78
      %p85 = scmp.eq.s32.totalorder %s26, 1
      %p86 = por %p84, %p85
      %p87 = scmp.ne.s32.totalorder %s78, %s79
      %p88 = scmp.eq.s32.totalorder %s26, 0
      %p89 = por %p87, %p88
      %p90 = scmp.ne.s32.totalorder %s78, %s79
      %p91 = scmp.eq.s32.totalorder %s27, 1
      %p92 = por %p90, %p91
      %p94 = scmp.ne.s32.totalorder %s79, %s93
      %p95 = scmp.eq.s32.totalorder %s27, 0
      %p96 = por %p94, %p95
      %s98 = sadd.s32 %s97, 1
      %p101 = scmp.eq.s32.totalorder %s21, 1
      %p102 = scmp.ne.s32.totalorder %s97, %s99
      %p103 = scmp.eq.s32.totalorder %s21, 0
      %p104 = por %p102, %p103
      %p105 = scmp.ne.s32.totalorder %s97, %s99
      %p106 = scmp.eq.s32.totalorder %s26, 1
      %p107 = por %p105, %p106
      %p108 = scmp.ne.s32.totalorder %s99, %s100
      %p109 = scmp.eq.s32.totalorder %s26, 0
      %p110 = por %p108, %p109
      %p111 = scmp.ne.s32.totalorder %s99, %s100
      %p112 = scmp.eq.s32.totalorder %s27, 1
      %p113 = por %p111, %p112
      %p115 = scmp.ne.s32.totalorder %s100, %s114
      %p116 = scmp.eq.s32.totalorder %s27, 0
      %p117 = por %p115, %p116
      %s119 = sadd.s32 %s118, 1
      %p122 = scmp.eq.s32.totalorder %s21, 1
      %p123 = scmp.ne.s32.totalorder %s118, %s120
      %p124 = scmp.eq.s32.totalorder %s21, 0
      %p125 = por %p123, %p124
      %p126 = scmp.ne.s32.totalorder %s118, %s120
      %p127 = scmp.eq.s32.totalorder %s26, 1
      %p128 = por %p126, %p127
      %p129 = scmp.ne.s32.totalorder %s120, %s121
      %p130 = scmp.eq.s32.totalorder %s26, 0
      %p131 = por %p129, %p130
      %p132 = scmp.ne.s32.totalorder %s120, %s121
      %p133 = scmp.eq.s32.totalorder %s27, 1
      %p134 = por %p132, %p133
      %p136 = scmp.ne.s32.totalorder %s121, %s135
      %p137 = scmp.eq.s32.totalorder %s27, 0
      %p138 = por %p136, %p137
      %s140 = sadd.s32 %s139, 1
      %p143 = scmp.eq.s32.totalorder %s21, 1
      %p144 = scmp.ne.s32.totalorder %s139, %s141
      %p145 = scmp.eq.s32.totalorder %s21, 0
      %p146 = por %p144, %p145
      %p147 = scmp.ne.s32.totalorder %s139, %s141
      %p148 = scmp.eq.s32.totalorder %s26, 1
      %p149 = por %p147, %p148
      %p150 = scmp.ne.s32.totalorder %s141, %s142
      %p151 = scmp.eq.s32.totalorder %s26, 0
      %p152 = por %p150, %p151
      %p153 = scmp.ne.s32.totalorder %s141, %s142
      %p154 = scmp.eq.s32.totalorder %s27, 1
      %p155 = por %p153, %p154
      %p157 = scmp.ne.s32.totalorder %s142, %s156
      %p158 = scmp.eq.s32.totalorder %s27, 0
      %p159 = por %p157, %p158
      %s161 = sadd.s32 %s160, 1
      %p164 = scmp.eq.s32.totalorder %s21, 1
      %p165 = scmp.ne.s32.totalorder %s160, %s162
      %p166 = scmp.eq.s32.totalorder %s21, 0
      %p167 = por %p165, %p166
      %p168 = scmp.ne.s32.totalorder %s160, %s162
      %p169 = scmp.eq.s32.totalorder %s26, 1
      %p170 = por %p168, %p169
      %p171 = scmp.ne.s32.totalorder %s162, %s163
      %p172 = scmp.eq.s32.totalorder %s26, 0
      %p173 = por %p171, %p172
      %p174 = scmp.ne.s32.totalorder %s162, %s163
      %p175 = scmp.eq.s32.totalorder %s27, 1
      %p176 = por %p174, %p175
      %p178 = scmp.ne.s32.totalorder %s163, %s177
      %p179 = scmp.eq.s32.totalorder %s27, 0
      %p180 = por %p178, %p179
      %s182 = sadd.s32 %s181, 1
      %p185 = scmp.eq.s32.totalorder %s21, 1
      %p186 = scmp.ne.s32.totalorder %s181, %s183
      %p187 = scmp.eq.s32.totalorder %s21, 0
      %p188 = por %p186, %p187
      %p189 = scmp.ne.s32.totalorder %s181, %s183
      %p190 = scmp.eq.s32.totalorder %s26, 1
      %p191 = por %p189, %p190
      %p192 = scmp.ne.s32.totalorder %s183, %s184
      %p193 = scmp.eq.s32.totalorder %s26, 0
      %p194 = por %p192, %p193
      %p195 = scmp.ne.s32.totalorder %s183, %s184
      %p196 = scmp.eq.s32.totalorder %s27, 1
      %p197 = por %p195, %p196
      %p199 = scmp.ne.s32.totalorder %s184, %s198
      %p200 = scmp.eq.s32.totalorder %s27, 0
      %p201 = por %p199, %p200
      %s202 = ssub.s32 %s21, %s28
      %p203 = scmp.eq.s32.totalorder %s202, 0
      %s205 = sadd.s32 %s204, 1
      %s206 = scalar_select %p203, %s204, %s205
      %p209 = pneg %p203
      %p210 = scmp.eq.s32.totalorder %s21, 1
      %p211 = por %p209, %p210
      %p212 = scmp.ne.s32.totalorder %s204, %s207
      %p213 = scmp.eq.s32.totalorder %s21, 0
      %p214 = por %p212, %p213
      %p215 = scmp.ne.s32.totalorder %s204, %s207
      %p216 = scmp.eq.s32.totalorder %s26, 1
      %p217 = por %p215, %p216
      %p218 = scmp.ne.s32.totalorder %s207, %s208
      %p219 = scmp.eq.s32.totalorder %s26, 0
      %p220 = por %p218, %p219
      %p221 = scmp.ne.s32.totalorder %s207, %s208
      %p222 = scmp.eq.s32.totalorder %s27, 1
      %p223 = por %p221, %p222
      %p225 = scmp.ne.s32.totalorder %s208, %s224
      %p226 = scmp.eq.s32.totalorder %s27, 0
      %p227 = por %p225, %p226
      %p228 = scmp.le.s32.totalorder 1, %s21
      %p229 = scmp.lt.s32.totalorder %s21, 3
      %p230 = pnand %p228, %p229
      %p231 = pneg %p230
      // Predicated region
      $region9: #{tpu_custom_call.1} parent=5 // pred_check
        _
      $region10: #{tpu_custom_call.1} parent=5 // pred_check_branch
        %233 = sbr.rel (%p230) target = $region12
      $region11: #{tpu_custom_call.1} parent=5 // pred_region
        %s234 = ssub.s32 %s21, 1
        // Predicated region
        $region13: #{tpu_custom_call.1} parent=11 // pred_check
          %p235 = pneg %p68
        $region14: #{tpu_custom_call.1} parent=11 // pred_check_branch
          %237 = sbr.rel (%p235) target = $region16
        $region15: #{tpu_custom_call.1} parent=11 // pred_region
          _
        $region16: #{tpu_custom_call.1} parent=11 // pred_fallthru
          _
        // Predicated region
        $region17: #{tpu_custom_call.1} parent=11 // pred_check
          %p238 = pneg %p89
        $region18: #{tpu_custom_call.1} parent=11 // pred_check_branch
          %240 = sbr.rel (%p238) target = $region20
        $region19: #{tpu_custom_call.1} parent=11 // pred_region
          _
        $region20: #{tpu_custom_call.1} parent=11 // pred_fallthru
          _
        // Predicated region
        $region21: #{tpu_custom_call.1} parent=11 // pred_check
          %p241 = pneg %p110
        $region22: #{tpu_custom_call.1} parent=11 // pred_check_branch
          %243 = sbr.rel (%p241) target = $region24
        $region23: #{tpu_custom_call.1} parent=11 // pred_region
          %s245 = ssub.s32 512, 512
          %246 = vsyncadd [#allocation6], %s245
          %s247 = sshll.u32 [#allocation5], 4
          %s248 = int_to_ptr.vmem [resolvable:$true] %s247
          %253 = dma.hbm_to_vmem [thread:$0]  %s3, 512, %s248, [#allocation6], 256, 256, 16
        $region24: #{tpu_custom_call.1} parent=11 // pred_fallthru
          _
        // Predicated region
        $region25: #{tpu_custom_call.1} parent=11 // pred_check
          %p254 = pneg %p131
        $region26: #{tpu_custom_call.1} parent=11 // pred_check_branch
          %256 = sbr.rel (%p254) target = $region28
        $region27: #{tpu_custom_call.1} parent=11 // pred_region
          _
        $region28: #{tpu_custom_call.1} parent=11 // pred_fallthru
          _
        // Predicated region
        $region29: #{tpu_custom_call.1} parent=11 // pred_check
          %p257 = pneg %p152
        $region30: #{tpu_custom_call.1} parent=11 // pred_check_branch
          %259 = sbr.rel (%p257) target = $region32
        $region31: #{tpu_custom_call.1} parent=11 // pred_region
          _
        $region32: #{tpu_custom_call.1} parent=11 // pred_fallthru
          _
        // Predicated region
        $region33: #{tpu_custom_call.1} parent=11 // pred_check
          %p260 = pneg %p173
        $region34: #{tpu_custom_call.1} parent=11 // pred_check_branch
          %262 = sbr.rel (%p260) target = $region36
        $region35: #{tpu_custom_call.1} parent=11 // pred_region
          _
        $region36: #{tpu_custom_call.1} parent=11 // pred_fallthru
          _
        // Predicated region
        $region37: #{tpu_custom_call.1} parent=11 // pred_check
          %p263 = pneg %p194
        $region38: #{tpu_custom_call.1} parent=11 // pred_check_branch
          %265 = sbr.rel (%p263) target = $region40
        $region39: #{tpu_custom_call.1} parent=11 // pred_region
          %s267 = ssub.s32 32768, 32768
          %268 = vsyncadd [#allocation6], %s267
          %s269 = sshll.u32 [#allocation7], 4
          %s270 = int_to_ptr.vmem [resolvable:$true] %s269
          %275 = dma.hbm_to_vmem [thread:$0]  %s7, 32768, %s270, [#allocation6], 1024, 1024, 64
        $region40: #{tpu_custom_call.1} parent=11 // pred_fallthru
          _
      $region12: #{tpu_custom_call.1} parent=5 // pred_fallthru
        _
      %p276 = scmp.lt.s32.totalorder %s21, 2
      // Predicated region
      $region41: #{tpu_custom_call.1} parent=5 // pred_check
        %p277 = pneg %p276
      $region42: #{tpu_custom_call.1} parent=5 // pred_check_branch
        %279 = sbr.rel (%p277) target = $region44
      $region43: #{tpu_custom_call.1} parent=5 // pred_region
        // Predicated region
        $region45: #{tpu_custom_call.1} parent=43 // pred_check
          %p280 = pneg %p41
        $region46: #{tpu_custom_call.1} parent=43 // pred_check_branch
          %282 = sbr.rel (%p280) target = $region48
        $region47: #{tpu_custom_call.1} parent=43 // pred_region
          %s283 = sand.u32 %s31, 1
          %s284 = scalar_lea.sflag [#allocation3], %s283
          %s285 = sand.u32 %s31, 1
          %s286 = smul.addr %s285, 32
          %s287 = scalar_lea.vmem [#allocation2], %s286
          %s289 = ssub.s32 512, 512
          %290 = vsyncadd %s284, %s289
          %s291 = smul.addr %s21, 4
          %s292 = smul.addr %s291, 128
          %s293 = scalar_lea.hbm %s0, %s292
          %s294 = sshll.u32 %s287, 4
          %s295 = int_to_ptr.vmem [resolvable:$true] %s294
          %300 = dma.hbm_to_vmem [thread:$0]  %s293, 512, %s295, %s284, 256, 256, 16
        $region48: #{tpu_custom_call.1} parent=43 // pred_fallthru
          _
      $region44: #{tpu_custom_call.1} parent=5 // pred_fallthru
        _
      %p301 = scmp.le.s32.totalorder 1, %s21
      %p302 = scmp.lt.s32.totalorder %s21, 3
      %p303 = pnand %p301, %p302
      %p304 = pneg %p303
      // Predicated region
      $region49: #{tpu_custom_call.1} parent=5 // pred_check
        _
      $region50: #{tpu_custom_call.1} parent=5 // pred_check_branch
        %306 = sbr.rel (%p303) target = $region52
      $region51: #{tpu_custom_call.1} parent=5 // pred_region
        %s307 = ssub.s32 %s21, 1
        %s308 = sand.u32 %s34, 1
        %s309 = scalar_lea.sflag [#allocation3], %s308
        %s310 = sand.u32 %s34, 1
        %s311 = smul.addr %s310, 32
        %s312 = scalar_lea.vmem [#allocation2], %s311
        // Predicated region
        $region53: #{tpu_custom_call.1} parent=51 // pred_check
          %p313 = pneg %p47
        $region54: #{tpu_custom_call.1} parent=51 // pred_check_branch
          %315 = sbr.rel (%p313) target = $region56
        $region55: #{tpu_custom_call.1} parent=51 // pred_region
          %316 = dma.done %s309, 512
        $region56: #{tpu_custom_call.1} parent=51 // pred_fallthru
          _
        // Predicated region
        $region57: #{tpu_custom_call.1} parent=51 // pred_check
          %p317 = pneg %p110
        $region58: #{tpu_custom_call.1} parent=51 // pred_check_branch
          %319 = sbr.rel (%p317) target = $region60
        $region59: #{tpu_custom_call.1} parent=51 // pred_region
          %320 = dma.done [#allocation6], 512
        $region60: #{tpu_custom_call.1} parent=51 // pred_fallthru
          _
        // Predicated region
        $region61: #{tpu_custom_call.1} parent=51 // pred_check
          %p321 = pneg %p194
        $region62: #{tpu_custom_call.1} parent=51 // pred_check_branch
          %323 = sbr.rel (%p321) target = $region64
        $region63: #{tpu_custom_call.1} parent=51 // pred_region
          %324 = dma.done [#allocation6], 32768
        $region64: #{tpu_custom_call.1} parent=51 // pred_fallthru
          _
        %s325 = sand.u32 %s34, 1
        %s326 = scalar_lea.sflag [#allocation3], %s325
        %s327 = sand.u32 %s34, 1
        %s328 = smul.addr %s327, 32
        %s329 = scalar_lea.vmem [#allocation2], %s328
        %p330 = pneg %p47
        %p331 = pneg %p44
        %p332 = pneg %p68
        %p333 = pneg %p65
        %p334 = pneg %p89
        %p335 = pneg %p86
        %p336 = pneg %p110
        %p337 = pneg %p107
        %p338 = pneg %p131
        %p339 = pneg %p128
        %p340 = pneg %p152
        %p341 = pneg %p149
        %p342 = pneg %p173
        %p343 = pneg %p170
        %p344 = pneg %p194
        %p345 = pneg %p191
        %p346 = pneg %p220
        %p347 = pneg %p217
        %s348 = sand.u32 %s207, 1
        %s349 = scalar_lea.sflag [#allocation4], %s348
        %s350 = sand.u32 %s207, 1
        %s351 = smul.addr %s350, 64
        %s352 = scalar_lea.vmem [#allocation8], %s351
        %v353 = vlaneseq
        %v354 = vand.u32 %v353, 127
        %v355 = vadd.s32 %v354, 128
        %v356 = vand.u32 %v354, 15
        %v357 = vand.u32 %v355, 15
        %vm358 = vcmp.ge.s32.totalorder %v354, 16
        %vm359 = vcmp.ge.s32.totalorder %v355, 16
        %vm360 = vcmp.lt.s32.totalorder %v354, 240
        %vm361 = vcmp.lt.s32.totalorder %v355, 240
        %vm362 = vcmp.ne.s32.totalorder %v356, 0
        %vm363 = vcmp.ne.s32.totalorder %v357, 0
        %vm364 = vcmp.ne.s32.totalorder %v356, 15
        %vm365 = vcmp.ne.s32.totalorder %v357, 15
        %v366 = vld [vmem:[%s312] sm:$0xff]
        %v367 = vld [vmem:[%s312 + $0x8] sm:$0xff]
        %v368 = vld [vmem:[%s312 + $0x10] sm:$0xff]
        %v369 = vld [vmem:[%s312 + $0x18] sm:$0xff]
        %v370 = vld [vmem:[%s1] sm:$0xff]
        %v371 = vld [vmem:[%s1 + $0x8] sm:$0xff]
        %v372 = vld [vmem:[%s1 + $0x10] sm:$0xff]
        %v373 = vld [vmem:[%s1 + $0x18] sm:$0xff]
        %v374 = vld [vmem:[%s2] sm:$0xff]
        %v375 = vld [vmem:[%s2 + $0x8] sm:$0xff]
        %376 = vrot.lane.b32.xlu0 %v366, 17
        %v377 = vpop.permute.xlu0 %376
        %378 = vrot.lane.b32.xlu0 %v368, 17
        %v379 = vpop.permute.xlu0 %378
        %380 = vrot.lane.b32.xlu0 %v367, 17
        %v381 = vpop.permute.xlu0 %380
        %382 = vrot.lane.b32.xlu0 %v369, 17
        %v383 = vpop.permute.xlu0 %382
        %vm384 = vcmp.lt.s32.totalorder %v354, 17
        %v385 = vsel %vm384, %v377, %v381
        %v386 = vsel %vm384, %v379, %v383
        %v387 = vsel %vm384, %v381, %v377
        %v388 = vsel %vm384, %v383, %v379
        %vm389 = vmand %vm358, %vm362
        %vm390 = vmand %vm359, %vm363
        %v391 = vsel %vm389, %v387, 0.0
        %v392 = vsel %vm390, %v385, 0.0
        %v393 = vsel %vm389, %v388, 0.0
        %v394 = vsel %vm390, %v386, 0.0
        %395 = vrot.lane.b32.xlu0 %v366, 16
        %v396 = vpop.permute.xlu0 %395
        %397 = vrot.lane.b32.xlu0 %v368, 16
        %v398 = vpop.permute.xlu0 %397
        %399 = vrot.lane.b32.xlu0 %v367, 16
        %v400 = vpop.permute.xlu0 %399
        %401 = vrot.lane.b32.xlu0 %v369, 16
        %v402 = vpop.permute.xlu0 %401
        %vm403 = vcmp.lt.s32.totalorder %v354, 16
        %v404 = vsel %vm403, %v396, %v400
        %v405 = vsel %vm403, %v398, %v402
        %v406 = vsel %vm403, %v400, %v396
        %v407 = vsel %vm403, %v402, %v398
        %v408 = vsel %vm358, %v406, 0.0
        %v409 = vsel %vm359, %v404, 0.0
        %v410 = vsel %vm358, %v407, 0.0
        %v411 = vsel %vm359, %v405, 0.0
        %412 = vrot.lane.b32.xlu0 %v366, 15
        %v413 = vpop.permute.xlu0 %412
        %414 = vrot.lane.b32.xlu0 %v368, 15
        %v415 = vpop.permute.xlu0 %414
        %416 = vrot.lane.b32.xlu0 %v367, 15
        %v417 = vpop.permute.xlu0 %416
        %418 = vrot.lane.b32.xlu0 %v369, 15
        %v419 = vpop.permute.xlu0 %418
        %vm420 = vcmp.lt.s32.totalorder %v354, 15
        %v421 = vsel %vm420, %v413, %v417
        %v422 = vsel %vm420, %v415, %v419
        %v423 = vsel %vm420, %v417, %v413
        %v424 = vsel %vm420, %v419, %v415
        %vm425 = vmand %vm358, %vm364
        %vm426 = vmand %vm359, %vm365
        %v427 = vsel %vm425, %v423, 0.0
        %v428 = vsel %vm426, %v421, 0.0
        %v429 = vsel %vm425, %v424, 0.0
        %v430 = vsel %vm426, %v422, 0.0
        %431 = vrot.lane.b32.xlu0 %v366, 1
        %v432 = vpop.permute.xlu0 %431
        %433 = vrot.lane.b32.xlu0 %v368, 1
        %v434 = vpop.permute.xlu0 %433
        %435 = vrot.lane.b32.xlu0 %v367, 1
        %v436 = vpop.permute.xlu0 %435
        %437 = vrot.lane.b32.xlu0 %v369, 1
        %v438 = vpop.permute.xlu0 %437
        %vm439 = vcmp.lt.s32.totalorder %v354, 1
        %v440 = vsel %vm439, %v432, %v436
        %v441 = vsel %vm439, %v434, %v438
        %v442 = vsel %vm439, %v436, %v432
        %v443 = vsel %vm439, %v438, %v434
        %v444 = vsel %vm362, %v442, 0.0
        %v445 = vsel %vm363, %v440, 0.0
        %v446 = vsel %vm362, %v443, 0.0
        %v447 = vsel %vm363, %v441, 0.0
        %448 = vrot.lane.b32.xlu0 %v366, 127
        %v449 = vpop.permute.xlu0 %448
        %450 = vrot.lane.b32.xlu0 %v368, 127
        %v451 = vpop.permute.xlu0 %450
        %452 = vrot.lane.b32.xlu0 %v367, 127
        %v453 = vpop.permute.xlu0 %452
        %454 = vrot.lane.b32.xlu0 %v369, 127
        %v455 = vpop.permute.xlu0 %454
        %vm456 = vcmp.lt.s32.totalorder %v354, 127
        %v457 = vsel %vm456, %v449, %v453
        %v458 = vsel %vm456, %v451, %v455
        %v459 = vsel %vm456, %v453, %v449
        %v460 = vsel %vm456, %v455, %v451
        %v461 = vsel %vm364, %v457, 0.0
        %v462 = vsel %vm365, %v459, 0.0
        %v463 = vsel %vm364, %v458, 0.0
        %v464 = vsel %vm365, %v460, 0.0
        %465 = vrot.lane.b32.xlu0 %v366, 113
        %v466 = vpop.permute.xlu0 %465
        %467 = vrot.lane.b32.xlu0 %v368, 113
        %v468 = vpop.permute.xlu0 %467
        %469 = vrot.lane.b32.xlu0 %v367, 113
        %v470 = vpop.permute.xlu0 %469
        %471 = vrot.lane.b32.xlu0 %v369, 113
        %v472 = vpop.permute.xlu0 %471
        %vm473 = vcmp.lt.s32.totalorder %v354, 113
        %v474 = vsel %vm473, %v466, %v470
        %v475 = vsel %vm473, %v468, %v472
        %v476 = vsel %vm473, %v470, %v466
        %v477 = vsel %vm473, %v472, %v468
        %vm478 = vmand %vm360, %vm362
        %vm479 = vmand %vm361, %vm363
        %v480 = vsel %vm478, %v474, 0.0
        %v481 = vsel %vm479, %v476, 0.0
        %v482 = vsel %vm478, %v475, 0.0
        %v483 = vsel %vm479, %v477, 0.0
        %484 = vrot.lane.b32.xlu0 %v366, 112
        %v485 = vpop.permute.xlu0 %484
        %486 = vrot.lane.b32.xlu0 %v368, 112
        %v487 = vpop.permute.xlu0 %486
        %488 = vrot.lane.b32.xlu0 %v367, 112
        %v489 = vpop.permute.xlu0 %488
        %490 = vrot.lane.b32.xlu0 %v369, 112
        %v491 = vpop.permute.xlu0 %490
        %vm492 = vcmp.lt.s32.totalorder %v354, 112
        %v493 = vsel %vm492, %v485, %v489
        %v494 = vsel %vm492, %v487, %v491
        %v495 = vsel %vm492, %v489, %v485
        %v496 = vsel %vm492, %v491, %v487
        %v497 = vsel %vm360, %v493, 0.0
        %v498 = vsel %vm361, %v495, 0.0
        %v499 = vsel %vm360, %v494, 0.0
        %v500 = vsel %vm361, %v496, 0.0
        %501 = vrot.lane.b32.xlu0 %v366, 111
        %v502 = vpop.permute.xlu0 %501
        %503 = vrot.lane.b32.xlu0 %v368, 111
        %v504 = vpop.permute.xlu0 %503
        %505 = vrot.lane.b32.xlu0 %v367, 111
        %v506 = vpop.permute.xlu0 %505
        %507 = vrot.lane.b32.xlu0 %v369, 111
        %v508 = vpop.permute.xlu0 %507
        %vm509 = vcmp.lt.s32.totalorder %v354, 111
        %v510 = vsel %vm509, %v502, %v506
        %v511 = vsel %vm509, %v504, %v508
        %v512 = vsel %vm509, %v506, %v502
        %v513 = vsel %vm509, %v508, %v504
        %vm514 = vmand %vm360, %vm364
        %vm515 = vmand %vm361, %vm365
        %v516 = vsel %vm514, %v510, 0.0
        %v517 = vsel %vm515, %v512, 0.0
        %v518 = vsel %vm514, %v511, 0.0
        %v519 = vsel %vm515, %v513, 0.0
        %521 = vset.pattern.permute.xlu0 0
        %522 = vperm.xlu0 %521, %v374
        %v523 = vpop.permute.xlu0 %522
        %526 = vset.pattern.permute.xlu0 0
        %527 = vperm.xlu0 %526, %v375
        %v528 = vpop.permute.xlu0 %527
        %vm530 = vcmask 130048
        %v532 = vsel %vm530, %v371, 0
        %v535 = vsel %vm530, %v373, 0
        %537 = vmatprep.subr.mxu0 %v392
        %538 = vmatpush1.msra.mxu0 %v391
        %539 = vmatprep.subr.mxu0 %v394
        %540 = vmatpush1.msra.mxu0 %v393
        %541 = vmatprep.subr.mxu0 %v409
        %542 = vmatpush1.msra.mxu0 %v408
        %543 = vmatprep.subr.mxu0 %v411
        %544 = vmatpush1.msra.mxu0 %v410
        %545 = vmatprep.subr.mxu0 %v428
        %546 = vmatpush1.msra.mxu0 %v427
        %547 = vmatprep.subr.mxu0 %v430
        %548 = vmatpush1.msra.mxu0 %v429
        %549 = vmatprep.subr.mxu0 %v445
        %550 = vmatpush1.msra.mxu0 %v444
        %551 = vmatprep.subr.mxu0 %v447
        %552 = vmatpush1.msra.mxu0 %v446
        %553 = vmatprep.subr.mxu0 %v367
        %554 = vmatpush1.msra.mxu0 %v366
        %555 = vmatprep.subr.mxu0 %v369
        %556 = vmatpush1.msra.mxu0 %v368
        %557 = vmatprep.subr.mxu0 %v462
        %558 = vmatpush1.msra.mxu0 %v461
        %559 = vmatprep.subr.mxu0 %v464
        %560 = vmatpush1.msra.mxu0 %v463
        %561 = vmatprep.subr.mxu0 %v481
        %562 = vmatpush1.msra.mxu0 %v480
        %563 = vmatprep.subr.mxu0 %v483
        %564 = vmatpush1.msra.mxu0 %v482
        %565 = vmatprep.subr.mxu0 %v498
        %566 = vmatpush1.msra.mxu0 %v497
        %567 = vmatprep.subr.mxu0 %v500
        %568 = vmatpush1.msra.mxu0 %v499
        %569 = vmatprep.subr.mxu0 %v517
        %570 = vmatpush1.msra.mxu0 %v516
        %571 = vmatprep.subr.mxu0 %v519
        %572 = vmatpush1.msra.mxu0 %v518
        %573 = vmatprep.subr.mxu0 0.0
        %574 = vmatpush1.msra.mxu0 0.0
        %575 = vmatprep.subr.mxu0 0.0
        %576 = vmatpush1.msra.mxu0 0.0
        %577 = vmatprep.subr.mxu0 0.0
        %578 = vmatpush1.msra.mxu0 0.0
        %579 = vmatprep.subr.mxu0 0.0
        %580 = vmatpush1.msra.mxu0 0.0
        %581 = vmatprep.subr.mxu0 0.0
        %582 = vmatpush1.msra.mxu0 0.0
        %583 = vmatprep.subr.mxu0 0.0
        %584 = vmatpush1.msra.mxu0 0.0
        %585 = vmatprep.subr.mxu0 0.0
        %586 = vmatpush1.msra.mxu0 0.0
        %587 = vmatprep.subr.mxu0 0.0
        %588 = vmatpush1.msra.mxu0 0.0
        %589 = vmatprep.subr.mxu0 0.0
        %590 = vmatpush1.msra.mxu0 0.0
        %591 = vmatprep.subr.mxu0 0.0
        %592 = vmatpush1.msra.mxu0 0.0
        %593 = vmatprep.subr.mxu0 0.0
        %594 = vmatpush1.msra.mxu0 0.0
        %595 = vmatprep.subr.mxu0 0.0
        %596 = vmatpush1.msra.mxu0 0.0
        %597 = vmatprep.subr.mxu0 0.0
        %598 = vmatpush1.msra.mxu0 0.0
        %599 = vmatprep.subr.mxu0 0.0
        %600 = vmatpush1.msra.mxu0 0.0
        %601 = vmatprep.mubr.f32.mxu0 %v532
        %602 = vmatmul.mubr.f32.gmra.mrb[0].mxu0 %v370
        %v603 = vpop.f32.mrb[0].mxu0
        %v604 = vadd.f32 %v523, %v603
        %v605 = vpop.f32.mrb[0].mxu0
        %v606 = vadd.f32 %v523, %v605
        %607 = vmatprep.mubr.f32.mxu0 %v535
        %608 = vmatmul.mubr.f32.gmra.mrb[0].mxu0 %v372
        %v609 = vpop.f32.mrb[0].mxu0
        %v610 = vadd.f32 %v528, %v609
        %v611 = vpop.f32.mrb[0].mxu0
        %v612 = vadd.f32 %v528, %v611
        %613 = vdwg.mxu0
        %v614 = vmax.f32 %v604, 0.0
        %v615 = vmax.f32 %v606, 0.0
        %v616 = vmax.f32 %v610, 0.0
        %v617 = vmax.f32 %v612, 0.0
        %v618 = vld [vmem:[#allocation5] sm:$0xff]
        %v619 = vld [vmem:[#allocation5 + $0x8] sm:$0xff]
        %v620 = vld [vmem:[#allocation5 + $0x10] sm:$0xff]
        %v621 = vld [vmem:[#allocation5 + $0x18] sm:$0xff]
        %v622 = vld [vmem:[%s4] sm:$0xff]
        %v623 = vld [vmem:[%s4 + $0x8] sm:$0xff]
        %624 = vrot.lane.b32.xlu0 %v614, 17
        %v625 = vpop.permute.xlu0 %624
        %626 = vrot.lane.b32.xlu0 %v616, 17
        %v627 = vpop.permute.xlu0 %626
        %628 = vrot.lane.b32.xlu0 %v615, 17
        %v629 = vpop.permute.xlu0 %628
        %630 = vrot.lane.b32.xlu0 %v617, 17
        %v631 = vpop.permute.xlu0 %630
        %v632 = vsel %vm384, %v625, %v629
        %v633 = vsel %vm384, %v627, %v631
        %v634 = vsel %vm384, %v629, %v625
        %v635 = vsel %vm384, %v631, %v627
        %v636 = vsel %vm389, %v634, 0.0
        %v637 = vsel %vm390, %v632, 0.0
        %v638 = vsel %vm389, %v635, 0.0
        %v639 = vsel %vm390, %v633, 0.0
        %640 = vrot.lane.b32.xlu0 %v614, 16
        %v641 = vpop.permute.xlu0 %640
        %642 = vrot.lane.b32.xlu0 %v616, 16
        %v643 = vpop.permute.xlu0 %642
        %644 = vrot.lane.b32.xlu0 %v615, 16
        %v645 = vpop.permute.xlu0 %644
        %646 = vrot.lane.b32.xlu0 %v617, 16
        %v647 = vpop.permute.xlu0 %646
        %v648 = vsel %vm403, %v641, %v645
        %v649 = vsel %vm403, %v643, %v647
        %v650 = vsel %vm403, %v645, %v641
        %v651 = vsel %vm403, %v647, %v643
        %v652 = vsel %vm358, %v650, 0.0
        %v653 = vsel %vm359, %v648, 0.0
        %v654 = vsel %vm358, %v651, 0.0
        %v655 = vsel %vm359, %v649, 0.0
        %656 = vrot.lane.b32.xlu0 %v614, 15
        %v657 = vpop.permute.xlu0 %656
        %658 = vrot.lane.b32.xlu0 %v616, 15
        %v659 = vpop.permute.xlu0 %658
        %660 = vrot.lane.b32.xlu0 %v615, 15
        %v661 = vpop.permute.xlu0 %660
        %662 = vrot.lane.b32.xlu0 %v617, 15
        %v663 = vpop.permute.xlu0 %662
        %v664 = vsel %vm420, %v657, %v661
        %v665 = vsel %vm420, %v659, %v663
        %v666 = vsel %vm420, %v661, %v657
        %v667 = vsel %vm420, %v663, %v659
        %v668 = vsel %vm425, %v666, 0.0
        %v669 = vsel %vm426, %v664, 0.0
        %v670 = vsel %vm425, %v667, 0.0
        %v671 = vsel %vm426, %v665, 0.0
        %672 = vrot.lane.b32.xlu0 %v614, 1
        %v673 = vpop.permute.xlu0 %672
        %674 = vrot.lane.b32.xlu0 %v616, 1
        %v675 = vpop.permute.xlu0 %674
        %676 = vrot.lane.b32.xlu0 %v615, 1
        %v677 = vpop.permute.xlu0 %676
        %678 = vrot.lane.b32.xlu0 %v617, 1
        %v679 = vpop.permute.xlu0 %678
        %v680 = vsel %vm439, %v673, %v677
        %v681 = vsel %vm439, %v675, %v679
        %v682 = vsel %vm439, %v677, %v673
        %v683 = vsel %vm439, %v679, %v675
        %v684 = vsel %vm362, %v682, 0.0
        %v685 = vsel %vm363, %v680, 0.0
        %v686 = vsel %vm362, %v683, 0.0
        %v687 = vsel %vm363, %v681, 0.0
        %688 = vrot.lane.b32.xlu0 %v614, 127
        %v689 = vpop.permute.xlu0 %688
        %690 = vrot.lane.b32.xlu0 %v616, 127
        %v691 = vpop.permute.xlu0 %690
        %692 = vrot.lane.b32.xlu0 %v615, 127
        %v693 = vpop.permute.xlu0 %692
        %694 = vrot.lane.b32.xlu0 %v617, 127
        %v695 = vpop.permute.xlu0 %694
        %v696 = vsel %vm456, %v689, %v693
        %v697 = vsel %vm456, %v691, %v695
        %v698 = vsel %vm456, %v693, %v689
        %v699 = vsel %vm456, %v695, %v691
        %v700 = vsel %vm364, %v696, 0.0
        %v701 = vsel %vm365, %v698, 0.0
        %v702 = vsel %vm364, %v697, 0.0
        %v703 = vsel %vm365, %v699, 0.0
        %704 = vrot.lane.b32.xlu0 %v614, 113
        %v705 = vpop.permute.xlu0 %704
        %706 = vrot.lane.b32.xlu0 %v616, 113
        %v707 = vpop.permute.xlu0 %706
        %708 = vrot.lane.b32.xlu0 %v615, 113
        %v709 = vpop.permute.xlu0 %708
        %710 = vrot.lane.b32.xlu0 %v617, 113
        %v711 = vpop.permute.xlu0 %710
        %v712 = vsel %vm473, %v705, %v709
        %v713 = vsel %vm473, %v707, %v711
        %v714 = vsel %vm473, %v709, %v705
        %v715 = vsel %vm473, %v711, %v707
        %v716 = vsel %vm478, %v712, 0.0
        %v717 = vsel %vm479, %v714, 0.0
        %v718 = vsel %vm478, %v713, 0.0
        %v719 = vsel %vm479, %v715, 0.0
        %720 = vrot.lane.b32.xlu0 %v614, 112
        %v721 = vpop.permute.xlu0 %720
        %722 = vrot.lane.b32.xlu0 %v616, 112
        %v723 = vpop.permute.xlu0 %722
        %724 = vrot.lane.b32.xlu0 %v615, 112
        %v725 = vpop.permute.xlu0 %724
        %726 = vrot.lane.b32.xlu0 %v617, 112
        %v727 = vpop.permute.xlu0 %726
        %v728 = vsel %vm492, %v721, %v725
        %v729 = vsel %vm492, %v723, %v727
        %v730 = vsel %vm492, %v725, %v721
        %v731 = vsel %vm492, %v727, %v723
        %v732 = vsel %vm360, %v728, 0.0
        %v733 = vsel %vm361, %v730, 0.0
        %v734 = vsel %vm360, %v729, 0.0
        %v735 = vsel %vm361, %v731, 0.0
        %736 = vrot.lane.b32.xlu0 %v614, 111
        %v737 = vpop.permute.xlu0 %736
        %738 = vrot.lane.b32.xlu0 %v616, 111
        %v739 = vpop.permute.xlu0 %738
        %740 = vrot.lane.b32.xlu0 %v615, 111
        %v741 = vpop.permute.xlu0 %740
        %742 = vrot.lane.b32.xlu0 %v617, 111
        %v743 = vpop.permute.xlu0 %742
        %v744 = vsel %vm509, %v737, %v741
        %v745 = vsel %vm509, %v739, %v743
        %v746 = vsel %vm509, %v741, %v737
        %v747 = vsel %vm509, %v743, %v739
        %v748 = vsel %vm514, %v744, 0.0
        %v749 = vsel %vm515, %v746, 0.0
        %v750 = vsel %vm514, %v745, 0.0
        %v751 = vsel %vm515, %v747, 0.0
        %753 = vset.pattern.permute.xlu0 0
        %754 = vperm.xlu0 %753, %v622
        %v755 = vpop.permute.xlu0 %754
        %758 = vset.pattern.permute.xlu0 0
        %759 = vperm.xlu0 %758, %v623
        %v760 = vpop.permute.xlu0 %759
        %v763 = vsel %vm530, %v619, 0
        %v766 = vsel %vm530, %v621, 0
        %768 = vmatprep.subr.mxu0 %v637
        %769 = vmatpush1.msra.mxu0 %v636
        %770 = vmatprep.subr.mxu0 %v639
        %771 = vmatpush1.msra.mxu0 %v638
        %772 = vmatprep.subr.mxu0 %v653
        %773 = vmatpush1.msra.mxu0 %v652
        %774 = vmatprep.subr.mxu0 %v655
        %775 = vmatpush1.msra.mxu0 %v654
        %776 = vmatprep.subr.mxu0 %v669
        %777 = vmatpush1.msra.mxu0 %v668
        %778 = vmatprep.subr.mxu0 %v671
        %779 = vmatpush1.msra.mxu0 %v670
        %780 = vmatprep.subr.mxu0 %v685
        %781 = vmatpush1.msra.mxu0 %v684
        %782 = vmatprep.subr.mxu0 %v687
        %783 = vmatpush1.msra.mxu0 %v686
        %784 = vmatprep.subr.mxu0 %v615
        %785 = vmatpush1.msra.mxu0 %v614
        %786 = vmatprep.subr.mxu0 %v617
        %787 = vmatpush1.msra.mxu0 %v616
        %788 = vmatprep.subr.mxu0 %v701
        %789 = vmatpush1.msra.mxu0 %v700
        %790 = vmatprep.subr.mxu0 %v703
        %791 = vmatpush1.msra.mxu0 %v702
        %792 = vmatprep.subr.mxu0 %v717
        %793 = vmatpush1.msra.mxu0 %v716
        %794 = vmatprep.subr.mxu0 %v719
        %795 = vmatpush1.msra.mxu0 %v718
        %796 = vmatprep.subr.mxu0 %v733
        %797 = vmatpush1.msra.mxu0 %v732
        %798 = vmatprep.subr.mxu0 %v735
        %799 = vmatpush1.msra.mxu0 %v734
        %800 = vmatprep.subr.mxu0 %v749
        %801 = vmatpush1.msra.mxu0 %v748
        %802 = vmatprep.subr.mxu0 %v751
        %803 = vmatpush1.msra.mxu0 %v750
        %804 = vmatprep.subr.mxu0 0.0
        %805 = vmatpush1.msra.mxu0 0.0
        %806 = vmatprep.subr.mxu0 0.0
        %807 = vmatpush1.msra.mxu0 0.0
        %808 = vmatprep.subr.mxu0 0.0
        %809 = vmatpush1.msra.mxu0 0.0
        %810 = vmatprep.subr.mxu0 0.0
        %811 = vmatpush1.msra.mxu0 0.0
        %812 = vmatprep.subr.mxu0 0.0
        %813 = vmatpush1.msra.mxu0 0.0
        %814 = vmatprep.subr.mxu0 0.0
        %815 = vmatpush1.msra.mxu0 0.0
        %816 = vmatprep.subr.mxu0 0.0
        %817 = vmatpush1.msra.mxu0 0.0
        %818 = vmatprep.subr.mxu0 0.0
        %819 = vmatpush1.msra.mxu0 0.0
        %820 = vmatprep.subr.mxu0 0.0
        %821 = vmatpush1.msra.mxu0 0.0
        %822 = vmatprep.subr.mxu0 0.0
        %823 = vmatpush1.msra.mxu0 0.0
        %824 = vmatprep.subr.mxu0 0.0
        %825 = vmatpush1.msra.mxu0 0.0
        %826 = vmatprep.subr.mxu0 0.0
        %827 = vmatpush1.msra.mxu0 0.0
        %828 = vmatprep.subr.mxu0 0.0
        %829 = vmatpush1.msra.mxu0 0.0
        %830 = vmatprep.subr.mxu0 0.0
        %831 = vmatpush1.msra.mxu0 0.0
        %832 = vmatprep.mubr.f32.mxu0 %v763
        %833 = vmatmul.mubr.f32.gmra.mrb[0].mxu0 %v618
        %v834 = vpop.f32.mrb[0].mxu0
        %v835 = vadd.f32 %v755, %v834
        %v836 = vpop.f32.mrb[0].mxu0
        %v837 = vadd.f32 %v755, %v836
        %838 = vmatprep.mubr.f32.mxu0 %v766
        %839 = vmatmul.mubr.f32.gmra.mrb[0].mxu0 %v620
        %v840 = vpop.f32.mrb[0].mxu0
        %v841 = vadd.f32 %v760, %v840
        %v842 = vpop.f32.mrb[0].mxu0
        %v843 = vadd.f32 %v760, %v842
        %844 = vdwg.mxu0
        %v845 = vmax.f32 %v835, 0.0
        %v846 = vmax.f32 %v837, 0.0
        %v847 = vmax.f32 %v841, 0.0
        %v848 = vmax.f32 %v843, 0.0
        %v849 = vld [vmem:[%s5] sm:$0xff]
        %v850 = vld [vmem:[%s6] sm:$0xff]
        %852 = vset.pattern.permute.xlu0 0
        %853 = vperm.xlu0 %852, %v850
        %v854 = vpop.permute.xlu0 %853
        %v857 = vsel %vm530, %v849, 0
        %859 = vmatprep.subr.mxu0 %v846
        %860 = vmatpush1.msra.mxu0 %v845
        %861 = vmatprep.subr.mxu0 %v848
        %862 = vmatpush1.msra.mxu0 %v847
        %863 = vmatprep.subr.mxu0 0.0
        %864 = vmatpush1.msra.mxu0 0.0
        %865 = vmatprep.subr.mxu0 0.0
        %866 = vmatpush1.msra.mxu0 0.0
        %867 = vmatprep.subr.mxu0 0.0
        %868 = vmatpush1.msra.mxu0 0.0
        %869 = vmatprep.subr.mxu0 0.0
        %870 = vmatpush1.msra.mxu0 0.0
        %871 = vmatprep.subr.mxu0 0.0
        %872 = vmatpush1.msra.mxu0 0.0
        %873 = vmatprep.subr.mxu0 0.0
        %874 = vmatpush1.msra.mxu0 0.0
        %875 = vmatprep.subr.mxu0 0.0
        %876 = vmatpush1.msra.mxu0 0.0
        %877 = vmatprep.subr.mxu0 0.0
        %878 = vmatpush1.msra.mxu0 0.0
        %879 = vmatprep.subr.mxu0 0.0
        %880 = vmatpush1.msra.mxu0 0.0
        %881 = vmatprep.subr.mxu0 0.0
        %882 = vmatpush1.msra.mxu0 0.0
        %883 = vmatprep.subr.mxu0 0.0
        %884 = vmatpush1.msra.mxu0 0.0
        %885 = vmatprep.subr.mxu0 0.0
        %886 = vmatpush1.msra.mxu0 0.0
        %887 = vmatprep.subr.mxu0 0.0
        %888 = vmatpush1.msra.mxu0 0.0
        %889 = vmatprep.subr.mxu0 0.0
        %890 = vmatpush1.msra.mxu0 0.0
        %891 = vmatprep.subr.mxu0 0.0
        %892 = vmatpush1.msra.mxu0 0.0
        %893 = vmatprep.subr.mxu0 0.0
        %894 = vmatpush1.msra.mxu0 0.0
        %895 = vmatprep.subr.mxu0 0.0
        %896 = vmatpush1.msra.mxu0 0.0
        %897 = vmatprep.subr.mxu0 0.0
        %898 = vmatpush1.msra.mxu0 0.0
        %899 = vmatprep.subr.mxu0 0.0
        %900 = vmatpush1.msra.mxu0 0.0
        %901 = vmatprep.subr.mxu0 0.0
        %902 = vmatpush1.msra.mxu0 0.0
        %903 = vmatprep.subr.mxu0 0.0
        %904 = vmatpush1.msra.mxu0 0.0
        %905 = vmatprep.subr.mxu0 0.0
        %906 = vmatpush1.msra.mxu0 0.0
        %907 = vmatprep.subr.mxu0 0.0
        %908 = vmatpush1.msra.mxu0 0.0
        %909 = vmatprep.subr.mxu0 0.0
        %910 = vmatpush1.msra.mxu0 0.0
        %911 = vmatprep.subr.mxu0 0.0
        %912 = vmatpush1.msra.mxu0 0.0
        %913 = vmatprep.subr.mxu0 0.0
        %914 = vmatpush1.msra.mxu0 0.0
        %915 = vmatprep.subr.mxu0 0.0
        %916 = vmatpush1.msra.mxu0 0.0
        %917 = vmatprep.subr.mxu0 0.0
        %918 = vmatpush1.msra.mxu0 0.0
        %919 = vmatprep.subr.mxu0 0.0
        %920 = vmatpush1.msra.mxu0 0.0
        %921 = vmatprep.subr.mxu0 0.0
        %922 = vmatpush1.msra.mxu0 0.0
        %923 = vmatprep.mubr.f32.mxu0 0.0
        %924 = vmatmul.mubr.f32.gmra.mrb[0].mxu0 %v857
        %v925 = vpop.f32.mrb[0].mxu0
        %v926 = vadd.f32 %v854, %v925
        %v927 = vpop.f32.mrb[0].mxu0
        %v928 = vadd.f32 %v854, %v927
        %929 = vdwg.mxu0
        %v930 = vld [vmem:[#allocation7] sm:$0xff]
        %v931 = vld [vmem:[#allocation7 + $0x8] sm:$0xff]
        %v932 = vld [vmem:[#allocation7 + $0x10] sm:$0xff]
        %v933 = vld [vmem:[#allocation7 + $0x18] sm:$0xff]
        %v934 = vld [vmem:[#allocation7 + $0x20] sm:$0xff]
        %v935 = vld [vmem:[#allocation7 + $0x28] sm:$0xff]
        %v936 = vld [vmem:[#allocation7 + $0x30] sm:$0xff]
        %v937 = vld [vmem:[#allocation7 + $0x38] sm:$0xff]
        %v938 = vld [vmem:[#allocation7 + $0x40] sm:$0xff]
        %v939 = vld [vmem:[#allocation7 + $0x48] sm:$0xff]
        %v940 = vld [vmem:[#allocation7 + $0x50] sm:$0xff]
        %v941 = vld [vmem:[#allocation7 + $0x58] sm:$0xff]
        %v942 = vld [vmem:[#allocation7 + $0x60] sm:$0xff]
        %v943 = vld [vmem:[#allocation7 + $0x68] sm:$0xff]
        %v944 = vld [vmem:[#allocation7 + $0x70] sm:$0xff]
        %v945 = vld [vmem:[#allocation7 + $0x78] sm:$0xff]
        %v946 = vld [vmem:[#allocation7 + $0x80] sm:$0xff]
        %v947 = vld [vmem:[#allocation7 + $0x88] sm:$0xff]
        %v948 = vld [vmem:[#allocation7 + $0x90] sm:$0xff]
        %v949 = vld [vmem:[#allocation7 + $0x98] sm:$0xff]
        %v950 = vld [vmem:[#allocation7 + $0xa0] sm:$0xff]
        %v951 = vld [vmem:[#allocation7 + $0xa8] sm:$0xff]
        %v952 = vld [vmem:[#allocation7 + $0xb0] sm:$0xff]
        %v953 = vld [vmem:[#allocation7 + $0xb8] sm:$0xff]
        %v954 = vld [vmem:[#allocation7 + $0xc0] sm:$0xff]
        %v955 = vld [vmem:[#allocation7 + $0xc8] sm:$0xff]
        %v956 = vld [vmem:[#allocation7 + $0xd0] sm:$0xff]
        %v957 = vld [vmem:[#allocation7 + $0xd8] sm:$0xff]
        %v958 = vld [vmem:[#allocation7 + $0xe0] sm:$0xff]
        %v959 = vld [vmem:[#allocation7 + $0xe8] sm:$0xff]
        %v960 = vld [vmem:[#allocation7 + $0xf0] sm:$0xff]
        %v961 = vld [vmem:[#allocation7 + $0xf8] sm:$0xff]
        %v962 = vld [vmem:[#allocation7 + $0x100] sm:$0xff]
        %v963 = vld [vmem:[#allocation7 + $0x108] sm:$0xff]
        %v964 = vld [vmem:[#allocation7 + $0x110] sm:$0xff]
        %v965 = vld [vmem:[#allocation7 + $0x118] sm:$0xff]
        %v966 = vld [vmem:[#allocation7 + $0x120] sm:$0xff]
        %v967 = vld [vmem:[#allocation7 + $0x128] sm:$0xff]
        %v968 = vld [vmem:[#allocation7 + $0x130] sm:$0xff]
        %v969 = vld [vmem:[#allocation7 + $0x138] sm:$0xff]
        %v970 = vld [vmem:[#allocation7 + $0x140] sm:$0xff]
        %v971 = vld [vmem:[#allocation7 + $0x148] sm:$0xff]
        %v972 = vld [vmem:[#allocation7 + $0x150] sm:$0xff]
        %v973 = vld [vmem:[#allocation7 + $0x158] sm:$0xff]
        %v974 = vld [vmem:[#allocation7 + $0x160] sm:$0xff]
        %v975 = vld [vmem:[#allocation7 + $0x168] sm:$0xff]
        %v976 = vld [vmem:[#allocation7 + $0x170] sm:$0xff]
        %v977 = vld [vmem:[#allocation7 + $0x178] sm:$0xff]
        %v978 = vld [vmem:[#allocation7 + $0x180] sm:$0xff]
        %v979 = vld [vmem:[#allocation7 + $0x188] sm:$0xff]
        %v980 = vld [vmem:[#allocation7 + $0x190] sm:$0xff]
        %v981 = vld [vmem:[#allocation7 + $0x198] sm:$0xff]
        %v982 = vld [vmem:[#allocation7 + $0x1a0] sm:$0xff]
        %v983 = vld [vmem:[#allocation7 + $0x1a8] sm:$0xff]
        %v984 = vld [vmem:[#allocation7 + $0x1b0] sm:$0xff]
        %v985 = vld [vmem:[#allocation7 + $0x1b8] sm:$0xff]
        %v986 = vld [vmem:[#allocation7 + $0x1c0] sm:$0xff]
        %v987 = vld [vmem:[#allocation7 + $0x1c8] sm:$0xff]
        %v988 = vld [vmem:[#allocation7 + $0x1d0] sm:$0xff]
        %v989 = vld [vmem:[#allocation7 + $0x1d8] sm:$0xff]
        %v990 = vld [vmem:[#allocation7 + $0x1e0] sm:$0xff]
        %v991 = vld [vmem:[#allocation7 + $0x1e8] sm:$0xff]
        %v992 = vld [vmem:[#allocation7 + $0x1f0] sm:$0xff]
        %v993 = vld [vmem:[#allocation7 + $0x1f8] sm:$0xff]
        %v994 = vld [vmem:[#allocation7 + $0x200] sm:$0xff]
        %v995 = vld [vmem:[#allocation7 + $0x208] sm:$0xff]
        %v996 = vld [vmem:[#allocation7 + $0x210] sm:$0xff]
        %v997 = vld [vmem:[#allocation7 + $0x218] sm:$0xff]
        %v998 = vld [vmem:[#allocation7 + $0x220] sm:$0xff]
        %v999 = vld [vmem:[#allocation7 + $0x228] sm:$0xff]
        %v1000 = vld [vmem:[#allocation7 + $0x230] sm:$0xff]
        %v1001 = vld [vmem:[#allocation7 + $0x238] sm:$0xff]
        %v1002 = vld [vmem:[#allocation7 + $0x240] sm:$0xff]
        %v1003 = vld [vmem:[#allocation7 + $0x248] sm:$0xff]
        %v1004 = vld [vmem:[#allocation7 + $0x250] sm:$0xff]
        %v1005 = vld [vmem:[#allocation7 + $0x258] sm:$0xff]
        %v1006 = vld [vmem:[#allocation7 + $0x260] sm:$0xff]
        %v1007 = vld [vmem:[#allocation7 + $0x268] sm:$0xff]
        %v1008 = vld [vmem:[#allocation7 + $0x270] sm:$0xff]
        %v1009 = vld [vmem:[#allocation7 + $0x278] sm:$0xff]
        %v1010 = vld [vmem:[#allocation7 + $0x280] sm:$0xff]
        %v1011 = vld [vmem:[#allocation7 + $0x288] sm:$0xff]
        %v1012 = vld [vmem:[#allocation7 + $0x290] sm:$0xff]
        %v1013 = vld [vmem:[#allocation7 + $0x298] sm:$0xff]
        %v1014 = vld [vmem:[#allocation7 + $0x2a0] sm:$0xff]
        %v1015 = vld [vmem:[#allocation7 + $0x2a8] sm:$0xff]
        %v1016 = vld [vmem:[#allocation7 + $0x2b0] sm:$0xff]
        %v1017 = vld [vmem:[#allocation7 + $0x2b8] sm:$0xff]
        %v1018 = vld [vmem:[#allocation7 + $0x2c0] sm:$0xff]
        %v1019 = vld [vmem:[#allocation7 + $0x2c8] sm:$0xff]
        %v1020 = vld [vmem:[#allocation7 + $0x2d0] sm:$0xff]
        %v1021 = vld [vmem:[#allocation7 + $0x2d8] sm:$0xff]
        %v1022 = vld [vmem:[#allocation7 + $0x2e0] sm:$0xff]
        %v1023 = vld [vmem:[#allocation7 + $0x2e8] sm:$0xff]
        %v1024 = vld [vmem:[#allocation7 + $0x2f0] sm:$0xff]
        %v1025 = vld [vmem:[#allocation7 + $0x2f8] sm:$0xff]
        %v1026 = vld [vmem:[#allocation7 + $0x300] sm:$0xff]
        %v1027 = vld [vmem:[#allocation7 + $0x308] sm:$0xff]
        %v1028 = vld [vmem:[#allocation7 + $0x310] sm:$0xff]
        %v1029 = vld [vmem:[#allocation7 + $0x318] sm:$0xff]
        %v1030 = vld [vmem:[#allocation7 + $0x320] sm:$0xff]
        %v1031 = vld [vmem:[#allocation7 + $0x328] sm:$0xff]
        %v1032 = vld [vmem:[#allocation7 + $0x330] sm:$0xff]
        %v1033 = vld [vmem:[#allocation7 + $0x338] sm:$0xff]
        %v1034 = vld [vmem:[#allocation7 + $0x340] sm:$0xff]
        %v1035 = vld [vmem:[#allocation7 + $0x348] sm:$0xff]
        %v1036 = vld [vmem:[#allocation7 + $0x350] sm:$0xff]
        %v1037 = vld [vmem:[#allocation7 + $0x358] sm:$0xff]
        %v1038 = vld [vmem:[#allocation7 + $0x360] sm:$0xff]
        %v1039 = vld [vmem:[#allocation7 + $0x368] sm:$0xff]
        %v1040 = vld [vmem:[#allocation7 + $0x370] sm:$0xff]
        %v1041 = vld [vmem:[#allocation7 + $0x378] sm:$0xff]
        %v1042 = vld [vmem:[#allocation7 + $0x380] sm:$0xff]
        %v1043 = vld [vmem:[#allocation7 + $0x388] sm:$0xff]
        %v1044 = vld [vmem:[#allocation7 + $0x390] sm:$0xff]
        %v1045 = vld [vmem:[#allocation7 + $0x398] sm:$0xff]
        %v1046 = vld [vmem:[#allocation7 + $0x3a0] sm:$0xff]
        %v1047 = vld [vmem:[#allocation7 + $0x3a8] sm:$0xff]
        %v1048 = vld [vmem:[#allocation7 + $0x3b0] sm:$0xff]
        %v1049 = vld [vmem:[#allocation7 + $0x3b8] sm:$0xff]
        %v1050 = vld [vmem:[#allocation7 + $0x3c0] sm:$0xff]
        %v1051 = vld [vmem:[#allocation7 + $0x3c8] sm:$0xff]
        %v1052 = vld [vmem:[#allocation7 + $0x3d0] sm:$0xff]
        %v1053 = vld [vmem:[#allocation7 + $0x3d8] sm:$0xff]
        %v1054 = vld [vmem:[#allocation7 + $0x3e0] sm:$0xff]
        %v1055 = vld [vmem:[#allocation7 + $0x3e8] sm:$0xff]
        %v1056 = vld [vmem:[#allocation7 + $0x3f0] sm:$0xff]
        %v1057 = vld [vmem:[#allocation7 + $0x3f8] sm:$0xff]
        %v1058 = vld [vmem:[#allocation7 + $0x400] sm:$0xff]
        %v1059 = vld [vmem:[#allocation7 + $0x408] sm:$0xff]
        %v1060 = vld [vmem:[#allocation7 + $0x410] sm:$0xff]
        %v1061 = vld [vmem:[#allocation7 + $0x418] sm:$0xff]
        %v1062 = vld [vmem:[#allocation7 + $0x420] sm:$0xff]
        %v1063 = vld [vmem:[#allocation7 + $0x428] sm:$0xff]
        %v1064 = vld [vmem:[#allocation7 + $0x430] sm:$0xff]
        %v1065 = vld [vmem:[#allocation7 + $0x438] sm:$0xff]
        %v1066 = vld [vmem:[#allocation7 + $0x440] sm:$0xff]
        %v1067 = vld [vmem:[#allocation7 + $0x448] sm:$0xff]
        %v1068 = vld [vmem:[#allocation7 + $0x450] sm:$0xff]
        %v1069 = vld [vmem:[#allocation7 + $0x458] sm:$0xff]
        %v1070 = vld [vmem:[#allocation7 + $0x460] sm:$0xff]
        %v1071 = vld [vmem:[#allocation7 + $0x468] sm:$0xff]
        %v1072 = vld [vmem:[#allocation7 + $0x470] sm:$0xff]
        %v1073 = vld [vmem:[#allocation7 + $0x478] sm:$0xff]
        %v1074 = vld [vmem:[#allocation7 + $0x480] sm:$0xff]
        %v1075 = vld [vmem:[#allocation7 + $0x488] sm:$0xff]
        %v1076 = vld [vmem:[#allocation7 + $0x490] sm:$0xff]
        %v1077 = vld [vmem:[#allocation7 + $0x498] sm:$0xff]
        %v1078 = vld [vmem:[#allocation7 + $0x4a0] sm:$0xff]
        %v1079 = vld [vmem:[#allocation7 + $0x4a8] sm:$0xff]
        %v1080 = vld [vmem:[#allocation7 + $0x4b0] sm:$0xff]
        %v1081 = vld [vmem:[#allocation7 + $0x4b8] sm:$0xff]
        %v1082 = vld [vmem:[#allocation7 + $0x4c0] sm:$0xff]
        %v1083 = vld [vmem:[#allocation7 + $0x4c8] sm:$0xff]
        %v1084 = vld [vmem:[#allocation7 + $0x4d0] sm:$0xff]
        %v1085 = vld [vmem:[#allocation7 + $0x4d8] sm:$0xff]
        %v1086 = vld [vmem:[#allocation7 + $0x4e0] sm:$0xff]
        %v1087 = vld [vmem:[#allocation7 + $0x4e8] sm:$0xff]
        %v1088 = vld [vmem:[#allocation7 + $0x4f0] sm:$0xff]
        %v1089 = vld [vmem:[#allocation7 + $0x4f8] sm:$0xff]
        %v1090 = vld [vmem:[#allocation7 + $0x500] sm:$0xff]
        %v1091 = vld [vmem:[#allocation7 + $0x508] sm:$0xff]
        %v1092 = vld [vmem:[#allocation7 + $0x510] sm:$0xff]
        %v1093 = vld [vmem:[#allocation7 + $0x518] sm:$0xff]
        %v1094 = vld [vmem:[#allocation7 + $0x520] sm:$0xff]
        %v1095 = vld [vmem:[#allocation7 + $0x528] sm:$0xff]
        %v1096 = vld [vmem:[#allocation7 + $0x530] sm:$0xff]
        %v1097 = vld [vmem:[#allocation7 + $0x538] sm:$0xff]
        %v1098 = vld [vmem:[#allocation7 + $0x540] sm:$0xff]
        %v1099 = vld [vmem:[#allocation7 + $0x548] sm:$0xff]
        %v1100 = vld [vmem:[#allocation7 + $0x550] sm:$0xff]
        %v1101 = vld [vmem:[#allocation7 + $0x558] sm:$0xff]
        %v1102 = vld [vmem:[#allocation7 + $0x560] sm:$0xff]
        %v1103 = vld [vmem:[#allocation7 + $0x568] sm:$0xff]
        %v1104 = vld [vmem:[#allocation7 + $0x570] sm:$0xff]
        %v1105 = vld [vmem:[#allocation7 + $0x578] sm:$0xff]
        %v1106 = vld [vmem:[#allocation7 + $0x580] sm:$0xff]
        %v1107 = vld [vmem:[#allocation7 + $0x588] sm:$0xff]
        %v1108 = vld [vmem:[#allocation7 + $0x590] sm:$0xff]
        %v1109 = vld [vmem:[#allocation7 + $0x598] sm:$0xff]
        %v1110 = vld [vmem:[#allocation7 + $0x5a0] sm:$0xff]
        %v1111 = vld [vmem:[#allocation7 + $0x5a8] sm:$0xff]
        %v1112 = vld [vmem:[#allocation7 + $0x5b0] sm:$0xff]
        %v1113 = vld [vmem:[#allocation7 + $0x5b8] sm:$0xff]
        %v1114 = vld [vmem:[#allocation7 + $0x5c0] sm:$0xff]
        %v1115 = vld [vmem:[#allocation7 + $0x5c8] sm:$0xff]
        %v1116 = vld [vmem:[#allocation7 + $0x5d0] sm:$0xff]
        %v1117 = vld [vmem:[#allocation7 + $0x5d8] sm:$0xff]
        %v1118 = vld [vmem:[#allocation7 + $0x5e0] sm:$0xff]
        %v1119 = vld [vmem:[#allocation7 + $0x5e8] sm:$0xff]
        %v1120 = vld [vmem:[#allocation7 + $0x5f0] sm:$0xff]
        %v1121 = vld [vmem:[#allocation7 + $0x5f8] sm:$0xff]
        %v1122 = vld [vmem:[#allocation7 + $0x600] sm:$0xff]
        %v1123 = vld [vmem:[#allocation7 + $0x608] sm:$0xff]
        %v1124 = vld [vmem:[#allocation7 + $0x610] sm:$0xff]
        %v1125 = vld [vmem:[#allocation7 + $0x618] sm:$0xff]
        %v1126 = vld [vmem:[#allocation7 + $0x620] sm:$0xff]
        %v1127 = vld [vmem:[#allocation7 + $0x628] sm:$0xff]
        %v1128 = vld [vmem:[#allocation7 + $0x630] sm:$0xff]
        %v1129 = vld [vmem:[#allocation7 + $0x638] sm:$0xff]
        %v1130 = vld [vmem:[#allocation7 + $0x640] sm:$0xff]
        %v1131 = vld [vmem:[#allocation7 + $0x648] sm:$0xff]
        %v1132 = vld [vmem:[#allocation7 + $0x650] sm:$0xff]
        %v1133 = vld [vmem:[#allocation7 + $0x658] sm:$0xff]
        %v1134 = vld [vmem:[#allocation7 + $0x660] sm:$0xff]
        %v1135 = vld [vmem:[#allocation7 + $0x668] sm:$0xff]
        %v1136 = vld [vmem:[#allocation7 + $0x670] sm:$0xff]
        %v1137 = vld [vmem:[#allocation7 + $0x678] sm:$0xff]
        %v1138 = vld [vmem:[#allocation7 + $0x680] sm:$0xff]
        %v1139 = vld [vmem:[#allocation7 + $0x688] sm:$0xff]
        %v1140 = vld [vmem:[#allocation7 + $0x690] sm:$0xff]
        %v1141 = vld [vmem:[#allocation7 + $0x698] sm:$0xff]
        %v1142 = vld [vmem:[#allocation7 + $0x6a0] sm:$0xff]
        %v1143 = vld [vmem:[#allocation7 + $0x6a8] sm:$0xff]
        %v1144 = vld [vmem:[#allocation7 + $0x6b0] sm:$0xff]
        %v1145 = vld [vmem:[#allocation7 + $0x6b8] sm:$0xff]
        %v1146 = vld [vmem:[#allocation7 + $0x6c0] sm:$0xff]
        %v1147 = vld [vmem:[#allocation7 + $0x6c8] sm:$0xff]
        %v1148 = vld [vmem:[#allocation7 + $0x6d0] sm:$0xff]
        %v1149 = vld [vmem:[#allocation7 + $0x6d8] sm:$0xff]
        %v1150 = vld [vmem:[#allocation7 + $0x6e0] sm:$0xff]
        %v1151 = vld [vmem:[#allocation7 + $0x6e8] sm:$0xff]
        %v1152 = vld [vmem:[#allocation7 + $0x6f0] sm:$0xff]
        %v1153 = vld [vmem:[#allocation7 + $0x6f8] sm:$0xff]
        %v1154 = vld [vmem:[#allocation7 + $0x700] sm:$0xff]
        %v1155 = vld [vmem:[#allocation7 + $0x708] sm:$0xff]
        %v1156 = vld [vmem:[#allocation7 + $0x710] sm:$0xff]
        %v1157 = vld [vmem:[#allocation7 + $0x718] sm:$0xff]
        %v1158 = vld [vmem:[#allocation7 + $0x720] sm:$0xff]
        %v1159 = vld [vmem:[#allocation7 + $0x728] sm:$0xff]
        %v1160 = vld [vmem:[#allocation7 + $0x730] sm:$0xff]
        %v1161 = vld [vmem:[#allocation7 + $0x738] sm:$0xff]
        %v1162 = vld [vmem:[#allocation7 + $0x740] sm:$0xff]
        %v1163 = vld [vmem:[#allocation7 + $0x748] sm:$0xff]
        %v1164 = vld [vmem:[#allocation7 + $0x750] sm:$0xff]
        %v1165 = vld [vmem:[#allocation7 + $0x758] sm:$0xff]
        %v1166 = vld [vmem:[#allocation7 + $0x760] sm:$0xff]
        %v1167 = vld [vmem:[#allocation7 + $0x768] sm:$0xff]
        %v1168 = vld [vmem:[#allocation7 + $0x770] sm:$0xff]
        %v1169 = vld [vmem:[#allocation7 + $0x778] sm:$0xff]
        %v1170 = vld [vmem:[#allocation7 + $0x780] sm:$0xff]
        %v1171 = vld [vmem:[#allocation7 + $0x788] sm:$0xff]
        %v1172 = vld [vmem:[#allocation7 + $0x790] sm:$0xff]
        %v1173 = vld [vmem:[#allocation7 + $0x798] sm:$0xff]
        %v1174 = vld [vmem:[#allocation7 + $0x7a0] sm:$0xff]
        %v1175 = vld [vmem:[#allocation7 + $0x7a8] sm:$0xff]
        %v1176 = vld [vmem:[#allocation7 + $0x7b0] sm:$0xff]
        %v1177 = vld [vmem:[#allocation7 + $0x7b8] sm:$0xff]
        %v1178 = vld [vmem:[#allocation7 + $0x7c0] sm:$0xff]
        %v1179 = vld [vmem:[#allocation7 + $0x7c8] sm:$0xff]
        %v1180 = vld [vmem:[#allocation7 + $0x7d0] sm:$0xff]
        %v1181 = vld [vmem:[#allocation7 + $0x7d8] sm:$0xff]
        %v1182 = vld [vmem:[#allocation7 + $0x7e0] sm:$0xff]
        %v1183 = vld [vmem:[#allocation7 + $0x7e8] sm:$0xff]
        %v1184 = vld [vmem:[#allocation7 + $0x7f0] sm:$0xff]
        %v1185 = vld [vmem:[#allocation7 + $0x7f8] sm:$0xff]
        %1186 = vmatprep.subr.mxu0 %v931
        %1187 = vmatpush1.msra.mxu0 %v930
        %1188 = vmatprep.subr.mxu0 %v939
        %1189 = vmatpush1.msra.mxu0 %v938
        %1190 = vmatprep.subr.mxu0 %v947
        %1191 = vmatpush1.msra.mxu0 %v946
        %1192 = vmatprep.subr.mxu0 %v955
        %1193 = vmatpush1.msra.mxu0 %v954
        %1194 = vmatprep.subr.mxu0 %v963
        %1195 = vmatpush1.msra.mxu0 %v962
        %1196 = vmatprep.subr.mxu0 %v971
        %1197 = vmatpush1.msra.mxu0 %v970
        %1198 = vmatprep.subr.mxu0 %v979
        %1199 = vmatpush1.msra.mxu0 %v978
        %1200 = vmatprep.subr.mxu0 %v987
        %1201 = vmatpush1.msra.mxu0 %v986
        %1202 = vmatprep.subr.mxu0 %v995
        %1203 = vmatpush1.msra.mxu0 %v994
        %1204 = vmatprep.subr.mxu0 %v1003
        %1205 = vmatpush1.msra.mxu0 %v1002
        %1206 = vmatprep.subr.mxu0 %v1011
        %1207 = vmatpush1.msra.mxu0 %v1010
        %1208 = vmatprep.subr.mxu0 %v1019
        %1209 = vmatpush1.msra.mxu0 %v1018
        %1210 = vmatprep.subr.mxu0 %v1027
        %1211 = vmatpush1.msra.mxu0 %v1026
        %1212 = vmatprep.subr.mxu0 %v1035
        %1213 = vmatpush1.msra.mxu0 %v1034
        %1214 = vmatprep.subr.mxu0 %v1043
        %1215 = vmatpush1.msra.mxu0 %v1042
        %1216 = vmatprep.subr.mxu0 %v1051
        %1217 = vmatpush1.msra.mxu0 %v1050
        %1218 = vmatprep.subr.mxu0 %v1059
        %1219 = vmatpush1.msra.mxu0 %v1058
        %1220 = vmatprep.subr.mxu0 %v1067
        %1221 = vmatpush1.msra.mxu0 %v1066
        %1222 = vmatprep.subr.mxu0 %v1075
        %1223 = vmatpush1.msra.mxu0 %v1074
        %1224 = vmatprep.subr.mxu0 %v1083
        %1225 = vmatpush1.msra.mxu0 %v1082
        %1226 = vmatprep.subr.mxu0 %v1091
        %1227 = vmatpush1.msra.mxu0 %v1090
        %1228 = vmatprep.subr.mxu0 %v1099
        %1229 = vmatpush1.msra.mxu0 %v1098
        %1230 = vmatprep.subr.mxu0 %v1107
        %1231 = vmatpush1.msra.mxu0 %v1106
        %1232 = vmatprep.subr.mxu0 %v1115
        %1233 = vmatpush1.msra.mxu0 %v1114
        %1234 = vmatprep.subr.mxu0 %v1123
        %1235 = vmatpush1.msra.mxu0 %v1122
        %1236 = vmatprep.subr.mxu0 %v1131
        %1237 = vmatpush1.msra.mxu0 %v1130
        %1238 = vmatprep.subr.mxu0 %v1139
        %1239 = vmatpush1.msra.mxu0 %v1138
        %1240 = vmatprep.subr.mxu0 %v1147
        %1241 = vmatpush1.msra.mxu0 %v1146
        %1242 = vmatprep.subr.mxu0 %v1155
        %1243 = vmatpush1.msra.mxu0 %v1154
        %1244 = vmatprep.subr.mxu0 %v1163
        %1245 = vmatpush1.msra.mxu0 %v1162
        %1246 = vmatprep.subr.mxu0 %v1171
        %1247 = vmatpush1.msra.mxu0 %v1170
        %1248 = vmatprep.subr.mxu0 %v1179
        %1249 = vmatpush1.msra.mxu0 %v1178
        %1250 = vmatprep.mubr.f32.mxu0 %v928
        %1251 = vmatmul.mubr.f32.gmra.mrb[0].mxu0 %v926
        %v1252 = vpop.f32.mrb[0].mxu0
        %v1253 = vadd.f32 0.0, %v1252
        %v1254 = vpop.f32.mrb[0].mxu0
        %v1255 = vadd.f32 0.0, %v1254
        %1256 = vdwg.mxu0
        %1257 = vmatprep.subr.mxu0 %v933
        %1258 = vmatpush1.msra.mxu0 %v932
        %1259 = vmatprep.subr.mxu0 %v941
        %1260 = vmatpush1.msra.mxu0 %v940
        %1261 = vmatprep.subr.mxu0 %v949
        %1262 = vmatpush1.msra.mxu0 %v948
        %1263 = vmatprep.subr.mxu0 %v957
        %1264 = vmatpush1.msra.mxu0 %v956
        %1265 = vmatprep.subr.mxu0 %v965
        %1266 = vmatpush1.msra.mxu0 %v964
        %1267 = vmatprep.subr.mxu0 %v973
        %1268 = vmatpush1.msra.mxu0 %v972
        %1269 = vmatprep.subr.mxu0 %v981
        %1270 = vmatpush1.msra.mxu0 %v980
        %1271 = vmatprep.subr.mxu0 %v989
        %1272 = vmatpush1.msra.mxu0 %v988
        %1273 = vmatprep.subr.mxu0 %v997
        %1274 = vmatpush1.msra.mxu0 %v996
        %1275 = vmatprep.subr.mxu0 %v1005
        %1276 = vmatpush1.msra.mxu0 %v1004
        %1277 = vmatprep.subr.mxu0 %v1013
        %1278 = vmatpush1.msra.mxu0 %v1012
        %1279 = vmatprep.subr.mxu0 %v1021
        %1280 = vmatpush1.msra.mxu0 %v1020
        %1281 = vmatprep.subr.mxu0 %v1029
        %1282 = vmatpush1.msra.mxu0 %v1028
        %1283 = vmatprep.subr.mxu0 %v1037
        %1284 = vmatpush1.msra.mxu0 %v1036
        %1285 = vmatprep.subr.mxu0 %v1045
        %1286 = vmatpush1.msra.mxu0 %v1044
        %1287 = vmatprep.subr.mxu0 %v1053
        %1288 = vmatpush1.msra.mxu0 %v1052
        %1289 = vmatprep.subr.mxu0 %v1061
        %1290 = vmatpush1.msra.mxu0 %v1060
        %1291 = vmatprep.subr.mxu0 %v1069
        %1292 = vmatpush1.msra.mxu0 %v1068
        %1293 = vmatprep.subr.mxu0 %v1077
        %1294 = vmatpush1.msra.mxu0 %v1076
        %1295 = vmatprep.subr.mxu0 %v1085
        %1296 = vmatpush1.msra.mxu0 %v1084
        %1297 = vmatprep.subr.mxu0 %v1093
        %1298 = vmatpush1.msra.mxu0 %v1092
        %1299 = vmatprep.subr.mxu0 %v1101
        %1300 = vmatpush1.msra.mxu0 %v1100
        %1301 = vmatprep.subr.mxu0 %v1109
        %1302 = vmatpush1.msra.mxu0 %v1108
        %1303 = vmatprep.subr.mxu0 %v1117
        %1304 = vmatpush1.msra.mxu0 %v1116
        %1305 = vmatprep.subr.mxu0 %v1125
        %1306 = vmatpush1.msra.mxu0 %v1124
        %1307 = vmatprep.subr.mxu0 %v1133
        %1308 = vmatpush1.msra.mxu0 %v1132
        %1309 = vmatprep.subr.mxu0 %v1141
        %1310 = vmatpush1.msra.mxu0 %v1140
        %1311 = vmatprep.subr.mxu0 %v1149
        %1312 = vmatpush1.msra.mxu0 %v1148
        %1313 = vmatprep.subr.mxu0 %v1157
        %1314 = vmatpush1.msra.mxu0 %v1156
        %1315 = vmatprep.subr.mxu0 %v1165
        %1316 = vmatpush1.msra.mxu0 %v1164
        %1317 = vmatprep.subr.mxu0 %v1173
        %1318 = vmatpush1.msra.mxu0 %v1172
        %1319 = vmatprep.subr.mxu0 %v1181
        %1320 = vmatpush1.msra.mxu0 %v1180
        %1321 = vmatprep.mubr.f32.mxu0 %v928
        %1322 = vmatmul.mubr.f32.gmra.mrb[0].mxu0 %v926
        %v1323 = vpop.f32.mrb[0].mxu0
        %v1324 = vadd.f32 0.0, %v1323
        %v1325 = vpop.f32.mrb[0].mxu0
        %v1326 = vadd.f32 0.0, %v1325
        %1327 = vdwg.mxu0
        %1328 = vmatprep.subr.mxu0 %v935
        %1329 = vmatpush1.msra.mxu0 %v934
        %1330 = vmatprep.subr.mxu0 %v943
        %1331 = vmatpush1.msra.mxu0 %v942
        %1332 = vmatprep.subr.mxu0 %v951
        %1333 = vmatpush1.msra.mxu0 %v950
        %1334 = vmatprep.subr.mxu0 %v959
        %1335 = vmatpush1.msra.mxu0 %v958
        %1336 = vmatprep.subr.mxu0 %v967
        %1337 = vmatpush1.msra.mxu0 %v966
        %1338 = vmatprep.subr.mxu0 %v975
        %1339 = vmatpush1.msra.mxu0 %v974
        %1340 = vmatprep.subr.mxu0 %v983
        %1341 = vmatpush1.msra.mxu0 %v982
        %1342 = vmatprep.subr.mxu0 %v991
        %1343 = vmatpush1.msra.mxu0 %v990
        %1344 = vmatprep.subr.mxu0 %v999
        %1345 = vmatpush1.msra.mxu0 %v998
        %1346 = vmatprep.subr.mxu0 %v1007
        %1347 = vmatpush1.msra.mxu0 %v1006
        %1348 = vmatprep.subr.mxu0 %v1015
        %1349 = vmatpush1.msra.mxu0 %v1014
        %1350 = vmatprep.subr.mxu0 %v1023
        %1351 = vmatpush1.msra.mxu0 %v1022
        %1352 = vmatprep.subr.mxu0 %v1031
        %1353 = vmatpush1.msra.mxu0 %v1030
        %1354 = vmatprep.subr.mxu0 %v1039
        %1355 = vmatpush1.msra.mxu0 %v1038
        %1356 = vmatprep.subr.mxu0 %v1047
        %1357 = vmatpush1.msra.mxu0 %v1046
        %1358 = vmatprep.subr.mxu0 %v1055
        %1359 = vmatpush1.msra.mxu0 %v1054
        %1360 = vmatprep.subr.mxu0 %v1063
        %1361 = vmatpush1.msra.mxu0 %v1062
        %1362 = vmatprep.subr.mxu0 %v1071
        %1363 = vmatpush1.msra.mxu0 %v1070
        %1364 = vmatprep.subr.mxu0 %v1079
        %1365 = vmatpush1.msra.mxu0 %v1078
        %1366 = vmatprep.subr.mxu0 %v1087
        %1367 = vmatpush1.msra.mxu0 %v1086
        %1368 = vmatprep.subr.mxu0 %v1095
        %1369 = vmatpush1.msra.mxu0 %v1094
        %1370 = vmatprep.subr.mxu0 %v1103
        %1371 = vmatpush1.msra.mxu0 %v1102
        %1372 = vmatprep.subr.mxu0 %v1111
        %1373 = vmatpush1.msra.mxu0 %v1110
        %1374 = vmatprep.subr.mxu0 %v1119
        %1375 = vmatpush1.msra.mxu0 %v1118
        %1376 = vmatprep.subr.mxu0 %v1127
        %1377 = vmatpush1.msra.mxu0 %v1126
        %1378 = vmatprep.subr.mxu0 %v1135
        %1379 = vmatpush1.msra.mxu0 %v1134
        %1380 = vmatprep.subr.mxu0 %v1143
        %1381 = vmatpush1.msra.mxu0 %v1142
        %1382 = vmatprep.subr.mxu0 %v1151
        %1383 = vmatpush1.msra.mxu0 %v1150
        %1384 = vmatprep.subr.mxu0 %v1159
        %1385 = vmatpush1.msra.mxu0 %v1158
        %1386 = vmatprep.subr.mxu0 %v1167
        %1387 = vmatpush1.msra.mxu0 %v1166
        %1388 = vmatprep.subr.mxu0 %v1175
        %1389 = vmatpush1.msra.mxu0 %v1174
        %1390 = vmatprep.subr.mxu0 %v1183
        %1391 = vmatpush1.msra.mxu0 %v1182
        %1392 = vmatprep.mubr.f32.mxu0 %v928
        %1393 = vmatmul.mubr.f32.gmra.mrb[0].mxu0 %v926
        %v1394 = vpop.f32.mrb[0].mxu0
        %v1395 = vadd.f32 0.0, %v1394
        %v1396 = vpop.f32.mrb[0].mxu0
        %v1397 = vadd.f32 0.0, %v1396
        %1398 = vdwg.mxu0
        %1399 = vmatprep.subr.mxu0 %v937
        %1400 = vmatpush1.msra.mxu0 %v936
        %1401 = vmatprep.subr.mxu0 %v945
        %1402 = vmatpush1.msra.mxu0 %v944
        %1403 = vmatprep.subr.mxu0 %v953
        %1404 = vmatpush1.msra.mxu0 %v952
        %1405 = vmatprep.subr.mxu0 %v961
        %1406 = vmatpush1.msra.mxu0 %v960
        %1407 = vmatprep.subr.mxu0 %v969
        %1408 = vmatpush1.msra.mxu0 %v968
        %1409 = vmatprep.subr.mxu0 %v977
        %1410 = vmatpush1.msra.mxu0 %v976
        %1411 = vmatprep.subr.mxu0 %v985
        %1412 = vmatpush1.msra.mxu0 %v984
        %1413 = vmatprep.subr.mxu0 %v993
        %1414 = vmatpush1.msra.mxu0 %v992
        %1415 = vmatprep.subr.mxu0 %v1001
        %1416 = vmatpush1.msra.mxu0 %v1000
        %1417 = vmatprep.subr.mxu0 %v1009
        %1418 = vmatpush1.msra.mxu0 %v1008
        %1419 = vmatprep.subr.mxu0 %v1017
        %1420 = vmatpush1.msra.mxu0 %v1016
        %1421 = vmatprep.subr.mxu0 %v1025
        %1422 = vmatpush1.msra.mxu0 %v1024
        %1423 = vmatprep.subr.mxu0 %v1033
        %1424 = vmatpush1.msra.mxu0 %v1032
        %1425 = vmatprep.subr.mxu0 %v1041
        %1426 = vmatpush1.msra.mxu0 %v1040
        %1427 = vmatprep.subr.mxu0 %v1049
        %1428 = vmatpush1.msra.mxu0 %v1048
        %1429 = vmatprep.subr.mxu0 %v1057
        %1430 = vmatpush1.msra.mxu0 %v1056
        %1431 = vmatprep.subr.mxu0 %v1065
        %1432 = vmatpush1.msra.mxu0 %v1064
        %1433 = vmatprep.subr.mxu0 %v1073
        %1434 = vmatpush1.msra.mxu0 %v1072
        %1435 = vmatprep.subr.mxu0 %v1081
        %1436 = vmatpush1.msra.mxu0 %v1080
        %1437 = vmatprep.subr.mxu0 %v1089
        %1438 = vmatpush1.msra.mxu0 %v1088
        %1439 = vmatprep.subr.mxu0 %v1097
        %1440 = vmatpush1.msra.mxu0 %v1096
        %1441 = vmatprep.subr.mxu0 %v1105
        %1442 = vmatpush1.msra.mxu0 %v1104
        %1443 = vmatprep.subr.mxu0 %v1113
        %1444 = vmatpush1.msra.mxu0 %v1112
        %1445 = vmatprep.subr.mxu0 %v1121
        %1446 = vmatpush1.msra.mxu0 %v1120
        %1447 = vmatprep.subr.mxu0 %v1129
        %1448 = vmatpush1.msra.mxu0 %v1128
        %1449 = vmatprep.subr.mxu0 %v1137
        %1450 = vmatpush1.msra.mxu0 %v1136
        %1451 = vmatprep.subr.mxu0 %v1145
        %1452 = vmatpush1.msra.mxu0 %v1144
        %1453 = vmatprep.subr.mxu0 %v1153
        %1454 = vmatpush1.msra.mxu0 %v1152
        %1455 = vmatprep.subr.mxu0 %v1161
        %1456 = vmatpush1.msra.mxu0 %v1160
        %1457 = vmatprep.subr.mxu0 %v1169
        %1458 = vmatpush1.msra.mxu0 %v1168
        %1459 = vmatprep.subr.mxu0 %v1177
        %1460 = vmatpush1.msra.mxu0 %v1176
        %1461 = vmatprep.subr.mxu0 %v1185
        %1462 = vmatpush1.msra.mxu0 %v1184
        %1463 = vmatprep.mubr.f32.mxu0 %v928
        %1464 = vmatmul.mubr.f32.gmra.mrb[0].mxu0 %v926
        %v1465 = vpop.f32.mrb[0].mxu0
        %v1466 = vadd.f32 0.0, %v1465
        %v1467 = vpop.f32.mrb[0].mxu0
        %v1468 = vadd.f32 0.0, %v1467
        %1469 = vdwg.mxu0
        %1470 = vst [vmem:[%s352] sm:$0xff] %v1253
        %1471 = vst [vmem:[%s352 + $0x8] sm:$0xff] %v1255
        %1472 = vst [vmem:[%s352 + $0x10] sm:$0xff] %v1324
        %1473 = vst [vmem:[%s352 + $0x18] sm:$0xff] %v1326
        %1474 = vst [vmem:[%s352 + $0x20] sm:$0xff] %v1395
        %1475 = vst [vmem:[%s352 + $0x28] sm:$0xff] %v1397
        %1476 = vst [vmem:[%s352 + $0x30] sm:$0xff] %v1466
        %1477 = vst [vmem:[%s352 + $0x38] sm:$0xff] %v1468
        %s1478 = sand.u32 %s207, 1
        %s1479 = scalar_lea.sflag [#allocation4], %s1478
        %s1480 = sand.u32 %s207, 1
        %s1481 = smul.addr %s1480, 64
        %s1482 = scalar_lea.vmem [#allocation8], %s1481
        // Predicated region
        $region65: #{tpu_custom_call.1} parent=51 // pred_check
          %p1483 = pneg %p217
        $region66: #{tpu_custom_call.1} parent=51 // pred_check_branch
          %1485 = sbr.rel (%p1483) target = $region68
        $region67: #{tpu_custom_call.1} parent=51 // pred_region
          %s1487 = ssub.s32 1024, 1024
          %1488 = vsyncadd %s1479, %s1487
          %s1489 = smul.addr %s26, 8
          %s1490 = smul.addr %s1489, 128
          %s1491 = scalar_lea.hbm %s8, %s1490
          %s1493 = sshll.u32 %s1482, 4
          %s1494 = int_to_ptr.vmem [resolvable:$true] %s1493
          %1496 = dma.vmem_to_hbm [thread:$0]  %s1494, 1024, %s1491, %s1479
        $region68: #{tpu_custom_call.1} parent=51 // pred_fallthru
          _
      $region52: #{tpu_custom_call.1} parent=5 // pred_fallthru
        _
      %p1497 = scmp.le.s32.totalorder 2, %s21
      // Predicated region
      $region69: #{tpu_custom_call.1} parent=5 // pred_check
        %p1498 = pneg %p1497
      $region70: #{tpu_custom_call.1} parent=5 // pred_check_branch
        %1500 = sbr.rel (%p1498) target = $region72
      $region71: #{tpu_custom_call.1} parent=5 // pred_region
        %s1501 = ssub.s32 %s21, 2
        // Predicated region
        $region73: #{tpu_custom_call.1} parent=71 // pred_check
          %p1502 = pneg %p223
        $region74: #{tpu_custom_call.1} parent=71 // pred_check_branch
          %1504 = sbr.rel (%p1502) target = $region76
        $region75: #{tpu_custom_call.1} parent=71 // pred_region
          %s1505 = sand.u32 %s208, 1
          %s1506 = scalar_lea.sflag [#allocation4], %s1505
          %s1507 = sand.u32 %s208, 1
          %s1508 = smul.addr %s1507, 64
          %s1509 = scalar_lea.vmem [#allocation8], %s1508
          %1510 = dma.done %s1506, 1024
        $region76: #{tpu_custom_call.1} parent=71 // pred_fallthru
          _
      $region72: #{tpu_custom_call.1} parent=5 // pred_fallthru
        _
    $region6: #{tpu_custom_call.1} parent=1 // loop_footer
      %s25 = sadd.s32 1, %s21
    $region7: #{tpu_custom_call.1} parent=1 // loop_footer_branch
      %20 = sbr.rel target = $region3
    $region8: #{tpu_custom_call.1} parent=1 // loop_exit
      _
    %1511 = vsyncpa [#allocation3], 1
    %s1512 = scalar_lea.sflag [#allocation3], 1
    %1513 = vsyncpa %s1512, 1
    %1514 = vsyncpa [#allocation6], 1
    %1515 = vsyncpa [#allocation4], 1
    %s1516 = scalar_lea.sflag [#allocation4], 1
    %1517 = vsyncpa %s1516, 1

</llo_original>
